<compile_context>
chip_gen: v5e
topology: v5e:2x2
jax: 0.10.0
libtpu: 0.0.40
codegen_flags: <defaults>
</compile_context>

<pallas_src>
import functools

import jax
import jax.numpy as jnp
from jax.experimental import pallas as pl
from jax.experimental.pallas import tpu as pltpu


# ----------------------------------------------------------------------------
# Shared fused body: LSTM stack + attention + output mapping for one step.
# ----------------------------------------------------------------------------
def _fused_step(inp, context, read_h, read_c, write_h, write_c,
                w_hm_ref, w_out_a_ref, w_out_b_ref, layer_refs, num_layers):
    f32 = jnp.float32
    for L in range(num_layers):                      # static unroll over layers
        (wi_i, wi_f, wi_g, wi_o,
         wh_i, wh_f, wh_g, wh_o,
         b_i, b_f, b_g, b_o) = layer_refs[12 * L:12 * (L + 1)]
        ph = read_h(L)                               # (BT, H)
        pc = read_c(L)                               # (BT, H)

        # Per-gate dots on pre-transposed weights: no lane-axis slicing, no .T.
        gi = (jnp.dot(inp, wi_i[...], preferred_element_type=f32)
              + jnp.dot(ph, wh_i[...], preferred_element_type=f32) + b_i[...])
        gf = (jnp.dot(inp, wi_f[...], preferred_element_type=f32)
              + jnp.dot(ph, wh_f[...], preferred_element_type=f32) + b_f[...])
        gg = (jnp.dot(inp, wi_g[...], preferred_element_type=f32)
              + jnp.dot(ph, wh_g[...], preferred_element_type=f32) + b_g[...])
        go = (jnp.dot(inp, wi_o[...], preferred_element_type=f32)
              + jnp.dot(ph, wh_o[...], preferred_element_type=f32) + b_o[...])

        i_gate = jax.nn.sigmoid(gi)
        f_gate = jax.nn.sigmoid(gf)
        g_gate = jnp.tanh(gg)
        o_gate = jax.nn.sigmoid(go)

        c_new = f_gate * pc + i_gate * g_gate
        h_new = o_gate * jnp.tanh(c_new)
        write_h(L, h_new)
        write_c(L, c_new)
        inp = h_new

    top_h = inp                                                     # (BT, H)
    mapped_h = jnp.dot(top_h, w_hm_ref[...], preferred_element_type=f32)

    ctx = context                                                   # (BT, Lc, H)
    # attn[b,l] = sum_h ctx[b,l,h] * mapped_h[b,h]  (VPU mul + XLU lane reduce;
    # avoids a batch of tiny MXU matmuls)
    attn = jnp.sum(ctx * mapped_h[:, None, :], axis=-1)             # (BT, Lc)
    attn = attn - jnp.max(attn, axis=-1, keepdims=True)
    e = jnp.exp(attn)
    inv_denom = pl.reciprocal(jnp.sum(e, axis=-1, keepdims=True), approx=True)
    attn_w = e * inv_denom                                          # (BT, Lc)

    # ctx_comb[b,h] = sum_l attn_w[b,l] * ctx[b,l,h]  (sublane reduce)
    ctx_comb = jnp.sum(attn_w[:, :, None] * ctx, axis=1)            # (BT, H)

    # output_mapping(cat([ctx, top_h], 1)) == ctx @ Wa^T + top_h @ Wb^T
    out = (jnp.dot(ctx_comb, w_out_a_ref[...], preferred_element_type=f32)
           + jnp.dot(top_h, w_out_b_ref[...], preferred_element_type=f32))
    return out


# ----------------------------------------------------------------------------
# Single-step kernel (matches nn.Module.forward).
# ----------------------------------------------------------------------------
def _step_kernel(num_layers, *refs):
    (xt_ref, prev_h_ref, prev_c_ref, context_ref,
     w_hm_ref, w_out_a_ref, w_out_b_ref) = refs[:7]
    layer_refs = refs[7:7 + 12 * num_layers]
    out_ref, hs_ref, cs_ref = refs[7 + 12 * num_layers:]

    def write_h(L, v):
        hs_ref[L] = v

    def write_c(L, v):
        cs_ref[L] = v

    out = _fused_step(
        xt_ref[...], context_ref[...],
        lambda L: prev_h_ref[L], lambda L: prev_c_ref[L],
        write_h, write_c,
        w_hm_ref, w_out_a_ref, w_out_b_ref, layer_refs, num_layers)
    out_ref[...] = out


# ----------------------------------------------------------------------------
# Multi-step (decode-loop fused) kernel: grid = (batch tiles, time steps).
# Weights stay resident in VMEM across time; h/c state is carried in the
# resident hT/cT output blocks (constant block index along the time axis).
# ----------------------------------------------------------------------------
def _decode_kernel(num_layers, *refs):
    (xts_ref, h0_ref, c0_ref, context_ref,
     w_hm_ref, w_out_a_ref, w_out_b_ref) = refs[:7]
    layer_refs = refs[7:7 + 12 * num_layers]
    outs_ref, hT_ref, cT_ref = refs[7 + 12 * num_layers:]

    t = pl.program_id(1)

    @pl.when(t == 0)
    def _():
        hT_ref[...] = h0_ref[...]
        cT_ref[...] = c0_ref[...]

    def write_h(L, v):
        hT_ref[L] = v

    def write_c(L, v):
        cT_ref[L] = v

    out = _fused_step(
        xts_ref[0], context_ref[...],
        lambda L: hT_ref[L], lambda L: cT_ref[L],
        write_h, write_c,
        w_hm_ref, w_out_a_ref, w_out_b_ref, layer_refs, num_layers)

    outs_ref[0] = out


# ----------------------------------------------------------------------------
# Host-side one-time weight preparation (transpose / per-gate split / bias sum
# / output-weight split).  PyTorch LSTMCell gate order: i, f, g, o.
# ----------------------------------------------------------------------------
def prepare_params(params):
    H = params['w_hm'].shape[0]
    layers = []
    for (w_ih, w_hh, b_ih, b_hh) in params['layers']:
        wi = [w_ih[g * H:(g + 1) * H, :].T for g in range(4)]   # (in_L, H) each
        wh = [w_hh[g * H:(g + 1) * H, :].T for g in range(4)]   # (H, H) each
        bs = [(b_ih[g * H:(g + 1) * H] + b_hh[g * H:(g + 1) * H]).reshape(1, H)
              for g in range(4)]                                # (1, H) each
        layers.append(tuple(wi + wh + bs))
    w_out = params['w_out']                                     # (H, 2H)
    return {
        'w_hm_t': params['w_hm'].T,                             # (H, H)
        'w_out_a_t': w_out[:, :H].T,                            # ctx half (H, H)
        'w_out_b_t': w_out[:, H:].T,                            # top_h half (H, H)
        'layers': layers,
    }


def _pad_batch(x, bp, axis):
    pad = bp - x.shape[axis]
    if pad == 0:
        return x
    widths = [(0, 0)] * x.ndim
    widths[axis] = (0, pad)
    return jnp.pad(x, widths)


def _flatten_layer_weights(prepped):
    flat = []
    for lw in prepped['layers']:
        flat += list(lw)
    return flat


# ----------------------------------------------------------------------------
# Wrappers
# ----------------------------------------------------------------------------
def ui2code_attention(xt, context, prev_h, prev_c, prepped, *, batch_tile=8):
    """Single forward step (same semantics as the PyTorch module.forward).

    prepped: output of prepare_params().  Batch is padded to a multiple of
    `batch_tile` (one sublane group) and tiled on a parallel grid axis.
    """
    num_layers = len(prepped['layers'])
    B, IN = xt.shape
    H = prev_h.shape[-1]
    Lc = context.shape[1]
    BT = batch_tile
    Bp = ((B + BT - 1) // BT) * BT

    xt_p = _pad_batch(xt, Bp, 0)
    context_p = _pad_batch(context, Bp, 0)
    prev_h_p = _pad_batch(prev_h, Bp, 1)
    prev_c_p = _pad_batch(prev_c, Bp, 1)

    layer_flat = _flatten_layer_weights(prepped)
    const2 = lambda b: (0, 0)

    in_specs = [
        pl.BlockSpec((BT, IN), lambda b: (b, 0)),
        pl.BlockSpec((num_layers, BT, H), lambda b: (0, b, 0)),
        pl.BlockSpec((num_layers, BT, H), lambda b: (0, b, 0)),
        pl.BlockSpec((BT, Lc, H), lambda b: (b, 0, 0)),
        pl.BlockSpec((H, H), const2),
        pl.BlockSpec((H, H), const2),
        pl.BlockSpec((H, H), const2),
    ] + [pl.BlockSpec(a.shape, const2) for a in layer_flat]

    out_specs = (
        pl.BlockSpec((BT, H), lambda b: (b, 0)),
        pl.BlockSpec((num_layers, BT, H), lambda b: (0, b, 0)),
        pl.BlockSpec((num_layers, BT, H), lambda b: (0, b, 0)),
    )
    out_shape = (
        jax.ShapeDtypeStruct((Bp, H), jnp.float32),
        jax.ShapeDtypeStruct((num_layers, Bp, H), jnp.float32),
        jax.ShapeDtypeStruct((num_layers, Bp, H), jnp.float32),
    )

    out, hs, cs = pl.pallas_call(
        functools.partial(_step_kernel, num_layers),
        out_shape=out_shape,
        grid=(Bp // BT,),
        in_specs=in_specs,
        out_specs=out_specs,
        compiler_params=pltpu.CompilerParams(
            dimension_semantics=("parallel",)),
    )(xt_p, prev_h_p, prev_c_p, context_p,
      prepped['w_hm_t'], prepped['w_out_a_t'], prepped['w_out_b_t'],
      *layer_flat)

    return out[:B], (hs[:, :B], cs[:, :B])


def ui2code_attention_decode(xts, context, h0, c0, prepped, *, batch_tile=8):
    """T forward steps fused in one pallas_call (time = 'arbitrary' grid axis).

    Weights use constant index_maps (resident in VMEM across steps); the h/c
    state is carried in the resident hT/cT output blocks.
    Returns (outs (T,B,H), (h_T, c_T)).
    """
    num_layers = len(prepped['layers'])
    T, B, IN = xts.shape
    H = h0.shape[-1]
    Lc = context.shape[1]
    BT = batch_tile
    Bp = ((B + BT - 1) // BT) * BT

    xts_p = _pad_batch(xts, Bp, 1)
    context_p = _pad_batch(context, Bp, 0)
    h0_p = _pad_batch(h0, Bp, 1)
    c0_p = _pad_batch(c0, Bp, 1)

    layer_flat = _flatten_layer_weights(prepped)
    constw = lambda b, t: (0, 0)

    in_specs = [
        pl.BlockSpec((1, BT, IN), lambda b, t: (t, b, 0)),
        pl.BlockSpec((num_layers, BT, H), lambda b, t: (0, b, 0)),
        pl.BlockSpec((num_layers, BT, H), lambda b, t: (0, b, 0)),
        pl.BlockSpec((BT, Lc, H), lambda b, t: (b, 0, 0)),
        pl.BlockSpec((H, H), constw),
        pl.BlockSpec((H, H), constw),
        pl.BlockSpec((H, H), constw),
    ] + [pl.BlockSpec(a.shape, constw) for a in layer_flat]

    out_specs = (
        pl.BlockSpec((1, BT, H), lambda b, t: (t, b, 0)),
        pl.BlockSpec((num_layers, BT, H), lambda b, t: (0, b, 0)),
        pl.BlockSpec((num_layers, BT, H), lambda b, t: (0, b, 0)),
    )
    out_shape = (
        jax.ShapeDtypeStruct((T, Bp, H), jnp.float32),
        jax.ShapeDtypeStruct((num_layers, Bp, H), jnp.float32),
        jax.ShapeDtypeStruct((num_layers, Bp, H), jnp.float32),
    )

    outs, hT, cT = pl.pallas_call(
        functools.partial(_decode_kernel, num_layers),
        out_shape=out_shape,
        grid=(Bp // BT, T),
        in_specs=in_specs,
        out_specs=out_specs,
        compiler_params=pltpu.CompilerParams(
            dimension_semantics=("parallel", "arbitrary")),
    )(xts_p, h0_p, c0_p, context_p,
      prepped['w_hm_t'], prepped['w_out_a_t'], prepped['w_out_b_t'],
      *layer_flat)

    return outs[:, :B], (hT[:, :B], cT[:, :B])


# ----------------------------------------------------------------------------
# Pure-JAX reference (uses the original, un-prepped PyTorch-layout params).
# ----------------------------------------------------------------------------
def ui2code_attention_ref(xt, context, prev_h, prev_c, params):
    inp = xt
    hs, cs = [], []
    for L, (w_ih, w_hh, b_ih, b_hh) in enumerate(params['layers']):
        H = prev_h.shape[-1]
        gates = inp @ w_ih.T + prev_h[L] @ w_hh.T + b_ih + b_hh
        i_g = jax.nn.sigmoid(gates[:, 0 * H:1 * H])
        f_g = jax.nn.sigmoid(gates[:, 1 * H:2 * H])
        g_g = jnp.tanh(gates[:, 2 * H:3 * H])
        o_g = jax.nn.sigmoid(gates[:, 3 * H:4 * H])
        c_new = f_g * prev_c[L] + i_g * g_g
        h_new = o_g * jnp.tanh(c_new)
        hs.append(h_new)
        cs.append(c_new)
        inp = h_new
    top_h = hs[-1]
    mapped_h = top_h @ params['w_hm'].T
    attn = jnp.einsum('blh,bh->bl', context, mapped_h)
    attn_w = jax.nn.softmax(attn, axis=-1)
    ctx_comb = jnp.einsum('bl,blh->bh', attn_w, context)
    out = jnp.concatenate([ctx_comb, top_h], axis=1) @ params['w_out'].T
    return out, (jnp.stack(hs), jnp.stack(cs))


if __name__ == "__main__":
    B = 2            # batch
    IN = 32          # input_size (target embedding size)
    H = 32           # num_hidden (decoder hidden size)
    LCTX = 8         # len(feature_map)
    NUM_LAYERS = 1   # module default
    T = 4            # decode steps for the fused-decode demo

    key = jax.random.PRNGKey(0)
    ks = jax.random.split(key, 12 + 4 * NUM_LAYERS)

    xt = jax.random.normal(ks[0], (B, IN), dtype=jnp.float32)
    context = jax.random.normal(ks[1], (B, LCTX, H), dtype=jnp.float32)
    prev_h = jax.random.normal(ks[2], (NUM_LAYERS, B, H), dtype=jnp.float32)
    prev_c = jax.random.normal(ks[3], (NUM_LAYERS, B, H), dtype=jnp.float32)
    xts = jax.random.normal(ks[4], (T, B, IN), dtype=jnp.float32)

    bound = 1.0 / jnp.sqrt(H)
    layers = []
    for L in range(NUM_LAYERS):
        in_L = IN if L == 0 else H
        kw = ks[5 + 4 * L: 9 + 4 * L]
        w_ih = jax.random.uniform(kw[0], (4 * H, in_L), jnp.float32, -bound, bound)
        w_hh = jax.random.uniform(kw[1], (4 * H, H), jnp.float32, -bound, bound)
        b_ih = jax.random.uniform(kw[2], (4 * H,), jnp.float32, -bound, bound)
        b_hh = jax.random.uniform(kw[3], (4 * H,), jnp.float32, -bound, bound)
        layers.append((w_ih, w_hh, b_ih, b_hh))

    w_hm = jax.random.uniform(ks[-2], (H, H), jnp.float32, -bound, bound)
    w_out = jax.random.uniform(ks[-1], (H, 2 * H), jnp.float32, -bound, bound)
    params = {'w_hm': w_hm, 'w_out': w_out, 'layers': layers}

    prepped = prepare_params(params)   # one-time host weight prep

    # --- single step (== module.forward) -----------------------------------
    out, (hs, cs) = ui2code_attention(xt, context, prev_h, prev_c, prepped)
    jax.block_until_ready((out, hs, cs))

    out_r, (hs_r, cs_r) = ui2code_attention_ref(xt, context, prev_h, prev_c, params)
    assert out.shape == (B, H)
    assert hs.shape == (NUM_LAYERS, B, H) and cs.shape == (NUM_LAYERS, B, H)
    # h/c don't go through the approximate reciprocal -> tight tolerance.
    assert jnp.allclose(hs, hs_r, atol=1e-5, rtol=1e-5)
    assert jnp.allclose(cs, cs_r, atol=1e-5, rtol=1e-5)
    # out goes through pl.reciprocal(approx=True) in the softmax -> slightly
    # looser tolerance (EUP approx reciprocal, ~2^-12 relative).
    assert jnp.allclose(out, out_r, atol=2e-3, rtol=2e-3)

    # --- fused multi-step decode (weights resident across T steps) ---------
    outs, (hT, cT) = ui2code_attention_decode(xts, context, prev_h, prev_c, prepped)
    jax.block_until_ready((outs, hT, cT))

    h_r, c_r = prev_h, prev_c
    outs_r = []
    for t in range(T):
        o_r, (h_r, c_r) = ui2code_attention_ref(xts[t], context, h_r, c_r, params)
        outs_r.append(o_r)
    outs_r = jnp.stack(outs_r)
    assert outs.shape == (T, B, H)
    assert jnp.allclose(hT, h_r, atol=1e-5, rtol=1e-5)
    assert jnp.allclose(cT, c_r, atol=1e-5, rtol=1e-5)
    assert jnp.allclose(outs, outs_r, atol=2e-3, rtol=2e-3)

    print("KERNEL_OK")
</pallas_src>

<mosaic_0001>
module attributes {stable_mosaic.version = 11 : i64} {
  func.func @_step_kernel(%arg0: i32, %arg1: memref<8x32xf32, #tpu.memory_space<vmem>>, %arg2: memref<1x8x32xf32, #tpu.memory_space<vmem>>, %arg3: memref<1x8x32xf32, #tpu.memory_space<vmem>>, %arg4: memref<8x8x32xf32, #tpu.memory_space<vmem>>, %arg5: memref<32x32xf32, #tpu.memory_space<vmem>>, %arg6: memref<32x32xf32, #tpu.memory_space<vmem>>, %arg7: memref<32x32xf32, #tpu.memory_space<vmem>>, %arg8: memref<32x32xf32, #tpu.memory_space<vmem>>, %arg9: memref<32x32xf32, #tpu.memory_space<vmem>>, %arg10: memref<32x32xf32, #tpu.memory_space<vmem>>, %arg11: memref<32x32xf32, #tpu.memory_space<vmem>>, %arg12: memref<32x32xf32, #tpu.memory_space<vmem>>, %arg13: memref<32x32xf32, #tpu.memory_space<vmem>>, %arg14: memref<32x32xf32, #tpu.memory_space<vmem>>, %arg15: memref<32x32xf32, #tpu.memory_space<vmem>>, %arg16: memref<1x32xf32, #tpu.memory_space<vmem>>, %arg17: memref<1x32xf32, #tpu.memory_space<vmem>>, %arg18: memref<1x32xf32, #tpu.memory_space<vmem>>, %arg19: memref<1x32xf32, #tpu.memory_space<vmem>>, %arg20: memref<8x32xf32, #tpu.memory_space<vmem>>, %arg21: memref<1x8x32xf32, #tpu.memory_space<vmem>>, %arg22: memref<1x8x32xf32, #tpu.memory_space<vmem>>) attributes {dimension_semantics = [#tpu.dimension_semantics<parallel>], iteration_bounds = array<i64: 1>, scalar_prefetch = 0 : i64, scratch_operands = 0 : i64, tpu.core_type = #tpu.core_type<tc>, window_params = [{transform_indices = @transform_0, window_bounds = array<i64: 8, 32>}, {transform_indices = @transform_1, window_bounds = array<i64: 1, 8, 32>}, {transform_indices = @transform_2, window_bounds = array<i64: 1, 8, 32>}, {transform_indices = @transform_3, window_bounds = array<i64: 8, 8, 32>}, {pipeline_mode = #tpu.pipeline_mode<synchronous>, transform_indices = @transform_4, window_bounds = array<i64: 32, 32>}, {pipeline_mode = #tpu.pipeline_mode<synchronous>, transform_indices = @transform_5, window_bounds = array<i64: 32, 32>}, {pipeline_mode = #tpu.pipeline_mode<synchronous>, transform_indices = @transform_6, window_bounds = array<i64: 32, 32>}, {pipeline_mode = #tpu.pipeline_mode<synchronous>, transform_indices = @transform_7, window_bounds = array<i64: 32, 32>}, {pipeline_mode = #tpu.pipeline_mode<synchronous>, transform_indices = @transform_8, window_bounds = array<i64: 32, 32>}, {pipeline_mode = #tpu.pipeline_mode<synchronous>, transform_indices = @transform_9, window_bounds = array<i64: 32, 32>}, {pipeline_mode = #tpu.pipeline_mode<synchronous>, transform_indices = @transform_10, window_bounds = array<i64: 32, 32>}, {pipeline_mode = #tpu.pipeline_mode<synchronous>, transform_indices = @transform_11, window_bounds = array<i64: 32, 32>}, {pipeline_mode = #tpu.pipeline_mode<synchronous>, transform_indices = @transform_12, window_bounds = array<i64: 32, 32>}, {pipeline_mode = #tpu.pipeline_mode<synchronous>, transform_indices = @transform_13, window_bounds = array<i64: 32, 32>}, {pipeline_mode = #tpu.pipeline_mode<synchronous>, transform_indices = @transform_14, window_bounds = array<i64: 32, 32>}, {pipeline_mode = #tpu.pipeline_mode<synchronous>, transform_indices = @transform_15, window_bounds = array<i64: 1, 32>}, {pipeline_mode = #tpu.pipeline_mode<synchronous>, transform_indices = @transform_16, window_bounds = array<i64: 1, 32>}, {pipeline_mode = #tpu.pipeline_mode<synchronous>, transform_indices = @transform_17, window_bounds = array<i64: 1, 32>}, {pipeline_mode = #tpu.pipeline_mode<synchronous>, transform_indices = @transform_18, window_bounds = array<i64: 1, 32>}, {transform_indices = @transform_19, window_bounds = array<i64: 8, 32>}, {transform_indices = @transform_20, window_bounds = array<i64: 1, 8, 32>}, {transform_indices = @transform_21, window_bounds = array<i64: 1, 8, 32>}]} {
    %c0 = arith.constant 0 : index
    %c0_0 = arith.constant 0 : index
    %0 = vector.load %arg1[%c0, %c0_0] : memref<8x32xf32, #tpu.memory_space<vmem>>, vector<8x32xf32>
    %c0_1 = arith.constant 0 : index
    %c0_2 = arith.constant 0 : index
    %c0_3 = arith.constant 0 : index
    %1 = vector.load %arg4[%c0_1, %c0_2, %c0_3] : memref<8x8x32xf32, #tpu.memory_space<vmem>>, vector<8x8x32xf32>
    %c0_4 = arith.constant 0 : index
    %c0_5 = arith.constant 0 : index
    %c0_6 = arith.constant 0 : index
    %2 = vector.load %arg2[%c0_4, %c0_5, %c0_6] : memref<1x8x32xf32, #tpu.memory_space<vmem>>, vector<1x8x32xf32>
    %3 = vector.shape_cast %2 : vector<1x8x32xf32> to vector<8x32xf32>
    %c0_7 = arith.constant 0 : index
    %c0_8 = arith.constant 0 : index
    %c0_9 = arith.constant 0 : index
    %4 = vector.load %arg3[%c0_7, %c0_8, %c0_9] : memref<1x8x32xf32, #tpu.memory_space<vmem>>, vector<1x8x32xf32>
    %5 = vector.shape_cast %4 : vector<1x8x32xf32> to vector<8x32xf32>
    %c0_10 = arith.constant 0 : index
    %c0_11 = arith.constant 0 : index
    %6 = vector.load %arg8[%c0_10, %c0_11] : memref<32x32xf32, #tpu.memory_space<vmem>>, vector<32x32xf32>
    %cst = arith.constant dense<0.000000e+00> : vector<8x32xf32>
    %7 = tpu.matmul %0, %6, %cst {dimension_numbers = #tpu.dot_dimension_numbers<[1], [0], [0], [1], [0, 0, 1, 1], [], []>} : vector<8x32xf32>, vector<32x32xf32>, vector<8x32xf32> -> vector<8x32xf32>
    %c0_12 = arith.constant 0 : index
    %c0_13 = arith.constant 0 : index
    %8 = vector.load %arg12[%c0_12, %c0_13] : memref<32x32xf32, #tpu.memory_space<vmem>>, vector<32x32xf32>
    %cst_14 = arith.constant dense<0.000000e+00> : vector<8x32xf32>
    %9 = tpu.matmul %3, %8, %cst_14 {dimension_numbers = #tpu.dot_dimension_numbers<[1], [0], [0], [1], [0, 0, 1, 1], [], []>} : vector<8x32xf32>, vector<32x32xf32>, vector<8x32xf32> -> vector<8x32xf32>
    %10 = arith.addf %7, %9 : vector<8x32xf32>
    %c0_15 = arith.constant 0 : index
    %c0_16 = arith.constant 0 : index
    %11 = vector.load %arg16[%c0_15, %c0_16] : memref<1x32xf32, #tpu.memory_space<vmem>>, vector<1x32xf32>
    %12 = vector.broadcast %11 : vector<1x32xf32> to vector<8x32xf32>
    %13 = arith.addf %10, %12 : vector<8x32xf32>
    %c0_17 = arith.constant 0 : index
    %c0_18 = arith.constant 0 : index
    %14 = vector.load %arg9[%c0_17, %c0_18] : memref<32x32xf32, #tpu.memory_space<vmem>>, vector<32x32xf32>
    %cst_19 = arith.constant dense<0.000000e+00> : vector<8x32xf32>
    %15 = tpu.matmul %0, %14, %cst_19 {dimension_numbers = #tpu.dot_dimension_numbers<[1], [0], [0], [1], [0, 0, 1, 1], [], []>} : vector<8x32xf32>, vector<32x32xf32>, vector<8x32xf32> -> vector<8x32xf32>
    %c0_20 = arith.constant 0 : index
    %c0_21 = arith.constant 0 : index
    %16 = vector.load %arg13[%c0_20, %c0_21] : memref<32x32xf32, #tpu.memory_space<vmem>>, vector<32x32xf32>
    %cst_22 = arith.constant dense<0.000000e+00> : vector<8x32xf32>
    %17 = tpu.matmul %3, %16, %cst_22 {dimension_numbers = #tpu.dot_dimension_numbers<[1], [0], [0], [1], [0, 0, 1, 1], [], []>} : vector<8x32xf32>, vector<32x32xf32>, vector<8x32xf32> -> vector<8x32xf32>
    %18 = arith.addf %15, %17 : vector<8x32xf32>
    %c0_23 = arith.constant 0 : index
    %c0_24 = arith.constant 0 : index
    %19 = vector.load %arg17[%c0_23, %c0_24] : memref<1x32xf32, #tpu.memory_space<vmem>>, vector<1x32xf32>
    %20 = vector.broadcast %19 : vector<1x32xf32> to vector<8x32xf32>
    %21 = arith.addf %18, %20 : vector<8x32xf32>
    %c0_25 = arith.constant 0 : index
    %c0_26 = arith.constant 0 : index
    %22 = vector.load %arg10[%c0_25, %c0_26] : memref<32x32xf32, #tpu.memory_space<vmem>>, vector<32x32xf32>
    %cst_27 = arith.constant dense<0.000000e+00> : vector<8x32xf32>
    %23 = tpu.matmul %0, %22, %cst_27 {dimension_numbers = #tpu.dot_dimension_numbers<[1], [0], [0], [1], [0, 0, 1, 1], [], []>} : vector<8x32xf32>, vector<32x32xf32>, vector<8x32xf32> -> vector<8x32xf32>
    %c0_28 = arith.constant 0 : index
    %c0_29 = arith.constant 0 : index
    %24 = vector.load %arg14[%c0_28, %c0_29] : memref<32x32xf32, #tpu.memory_space<vmem>>, vector<32x32xf32>
    %cst_30 = arith.constant dense<0.000000e+00> : vector<8x32xf32>
    %25 = tpu.matmul %3, %24, %cst_30 {dimension_numbers = #tpu.dot_dimension_numbers<[1], [0], [0], [1], [0, 0, 1, 1], [], []>} : vector<8x32xf32>, vector<32x32xf32>, vector<8x32xf32> -> vector<8x32xf32>
    %26 = arith.addf %23, %25 : vector<8x32xf32>
    %c0_31 = arith.constant 0 : index
    %c0_32 = arith.constant 0 : index
    %27 = vector.load %arg18[%c0_31, %c0_32] : memref<1x32xf32, #tpu.memory_space<vmem>>, vector<1x32xf32>
    %28 = vector.broadcast %27 : vector<1x32xf32> to vector<8x32xf32>
    %29 = arith.addf %26, %28 : vector<8x32xf32>
    %c0_33 = arith.constant 0 : index
    %c0_34 = arith.constant 0 : index
    %30 = vector.load %arg11[%c0_33, %c0_34] : memref<32x32xf32, #tpu.memory_space<vmem>>, vector<32x32xf32>
    %cst_35 = arith.constant dense<0.000000e+00> : vector<8x32xf32>
    %31 = tpu.matmul %0, %30, %cst_35 {dimension_numbers = #tpu.dot_dimension_numbers<[1], [0], [0], [1], [0, 0, 1, 1], [], []>} : vector<8x32xf32>, vector<32x32xf32>, vector<8x32xf32> -> vector<8x32xf32>
    %c0_36 = arith.constant 0 : index
    %c0_37 = arith.constant 0 : index
    %32 = vector.load %arg15[%c0_36, %c0_37] : memref<32x32xf32, #tpu.memory_space<vmem>>, vector<32x32xf32>
    %cst_38 = arith.constant dense<0.000000e+00> : vector<8x32xf32>
    %33 = tpu.matmul %3, %32, %cst_38 {dimension_numbers = #tpu.dot_dimension_numbers<[1], [0], [0], [1], [0, 0, 1, 1], [], []>} : vector<8x32xf32>, vector<32x32xf32>, vector<8x32xf32> -> vector<8x32xf32>
    %34 = arith.addf %31, %33 : vector<8x32xf32>
    %c0_39 = arith.constant 0 : index
    %c0_40 = arith.constant 0 : index
    %35 = vector.load %arg19[%c0_39, %c0_40] : memref<1x32xf32, #tpu.memory_space<vmem>>, vector<1x32xf32>
    %36 = vector.broadcast %35 : vector<1x32xf32> to vector<8x32xf32>
    %37 = arith.addf %34, %36 : vector<8x32xf32>
    %38 = arith.negf %13 : vector<8x32xf32>
    %39 = math.exp %38 : vector<8x32xf32>
    %cst_41 = arith.constant 1.000000e+00 : f32
    %40 = vector.broadcast %cst_41 : f32 to vector<8x32xf32>
    %41 = arith.addf %40, %39 : vector<8x32xf32>
    %42 = arith.divf %40, %41 : vector<8x32xf32>
    %43 = arith.negf %21 : vector<8x32xf32>
    %44 = math.exp %43 : vector<8x32xf32>
    %cst_42 = arith.constant 1.000000e+00 : f32
    %45 = vector.broadcast %cst_42 : f32 to vector<8x32xf32>
    %46 = arith.addf %45, %44 : vector<8x32xf32>
    %47 = arith.divf %45, %46 : vector<8x32xf32>
    %48 = math.tanh %29 : vector<8x32xf32>
    %49 = arith.negf %37 : vector<8x32xf32>
    %50 = math.exp %49 : vector<8x32xf32>
    %cst_43 = arith.constant 1.000000e+00 : f32
    %51 = vector.broadcast %cst_43 : f32 to vector<8x32xf32>
    %52 = arith.addf %51, %50 : vector<8x32xf32>
    %53 = arith.divf %51, %52 : vector<8x32xf32>
    %54 = arith.mulf %47, %5 : vector<8x32xf32>
    %55 = arith.mulf %42, %48 : vector<8x32xf32>
    %56 = arith.addf %54, %55 : vector<8x32xf32>
    %57 = math.tanh %56 : vector<8x32xf32>
    %58 = arith.mulf %53, %57 : vector<8x32xf32>
    %c0_44 = arith.constant 0 : index
    %c0_45 = arith.constant 0 : index
    %c0_46 = arith.constant 0 : index
    %59 = vector.load %arg21[%c0_44, %c0_45, %c0_46] : memref<1x8x32xf32, #tpu.memory_space<vmem>>, vector<1x8x32xf32>
    %60 = vector.shape_cast %59 : vector<1x8x32xf32> to vector<8x32xf32>
    %61 = vector.shape_cast %58 : vector<8x32xf32> to vector<1x8x32xf32>
    tpu.vector_store %arg21[%c0_44, %c0_45, %c0_46], %61 {strides = array<i32>} : memref<1x8x32xf32, #tpu.memory_space<vmem>>, vector<1x8x32xf32>,
    %c0_47 = arith.constant 0 : index
    %c0_48 = arith.constant 0 : index
    %c0_49 = arith.constant 0 : index
    %62 = vector.load %arg22[%c0_47, %c0_48, %c0_49] : memref<1x8x32xf32, #tpu.memory_space<vmem>>, vector<1x8x32xf32>
    %63 = vector.shape_cast %62 : vector<1x8x32xf32> to vector<8x32xf32>
    %64 = vector.shape_cast %56 : vector<8x32xf32> to vector<1x8x32xf32>
    tpu.vector_store %arg22[%c0_47, %c0_48, %c0_49], %64 {strides = array<i32>} : memref<1x8x32xf32, #tpu.memory_space<vmem>>, vector<1x8x32xf32>,
    %c0_50 = arith.constant 0 : index
    %c0_51 = arith.constant 0 : index
    %65 = vector.load %arg5[%c0_50, %c0_51] : memref<32x32xf32, #tpu.memory_space<vmem>>, vector<32x32xf32>
    %cst_52 = arith.constant dense<0.000000e+00> : vector<8x32xf32>
    %66 = tpu.matmul %58, %65, %cst_52 {dimension_numbers = #tpu.dot_dimension_numbers<[1], [0], [0], [1], [0, 0, 1, 1], [], []>} : vector<8x32xf32>, vector<32x32xf32>, vector<8x32xf32> -> vector<8x32xf32>
    %67 = vector.shape_cast %66 : vector<8x32xf32> to vector<8x1x32xf32>
    %68 = vector.broadcast %67 : vector<8x1x32xf32> to vector<8x8x32xf32>
    %69 = arith.mulf %1, %68 : vector<8x8x32xf32>
    %cst_53 = arith.constant dense<0.000000e+00> : vector<8x8xf32>
    %70 = vector.multi_reduction <add>, %69, %cst_53 [2] : vector<8x8x32xf32> to vector<8x8xf32>
    %cst_54 = arith.constant dense<0xFF800000> : vector<8xf32>
    %71 = vector.multi_reduction <maximumf>, %70, %cst_54 [1] : vector<8x8xf32> to vector<8xf32>
    %72 = vector.shape_cast %71 : vector<8xf32> to vector<8x1xf32>
    %73 = vector.broadcast %72 : vector<8x1xf32> to vector<8x8xf32>
    %74 = arith.subf %70, %73 : vector<8x8xf32>
    %75 = math.exp %74 : vector<8x8xf32>
    %cst_55 = arith.constant dense<0.000000e+00> : vector<8xf32>
    %76 = vector.multi_reduction <add>, %75, %cst_55 [1] : vector<8x8xf32> to vector<8xf32>
    %77 = vector.shape_cast %76 : vector<8xf32> to vector<8x1xf32>
    %78 = tpu.reciprocal %77 {approx = true} : vector<8x1xf32> -> vector<8x1xf32>
    %79 = vector.broadcast %78 : vector<8x1xf32> to vector<8x8xf32>
    %80 = arith.mulf %75, %79 : vector<8x8xf32>
    %81 = vector.shape_cast %80 : vector<8x8xf32> to vector<8x8x1xf32>
    %82 = vector.broadcast %81 : vector<8x8x1xf32> to vector<8x8x32xf32>
    %83 = arith.mulf %82, %1 : vector<8x8x32xf32>
    %cst_56 = arith.constant dense<0.000000e+00> : vector<8x32xf32>
    %84 = vector.multi_reduction <add>, %83, %cst_56 [1] : vector<8x8x32xf32> to vector<8x32xf32>
    %c0_57 = arith.constant 0 : index
    %c0_58 = arith.constant 0 : index
    %85 = vector.load %arg6[%c0_57, %c0_58] : memref<32x32xf32, #tpu.memory_space<vmem>>, vector<32x32xf32>
    %cst_59 = arith.constant dense<0.000000e+00> : vector<8x32xf32>
    %86 = tpu.matmul %84, %85, %cst_59 {dimension_numbers = #tpu.dot_dimension_numbers<[1], [0], [0], [1], [0, 0, 1, 1], [], []>} : vector<8x32xf32>, vector<32x32xf32>, vector<8x32xf32> -> vector<8x32xf32>
    %c0_60 = arith.constant 0 : index
    %c0_61 = arith.constant 0 : index
    %87 = vector.load %arg7[%c0_60, %c0_61] : memref<32x32xf32, #tpu.memory_space<vmem>>, vector<32x32xf32>
    %cst_62 = arith.constant dense<0.000000e+00> : vector<8x32xf32>
    %88 = tpu.matmul %58, %87, %cst_62 {dimension_numbers = #tpu.dot_dimension_numbers<[1], [0], [0], [1], [0, 0, 1, 1], [], []>} : vector<8x32xf32>, vector<32x32xf32>, vector<8x32xf32> -> vector<8x32xf32>
    %89 = arith.addf %86, %88 : vector<8x32xf32>
    %c0_63 = arith.constant 0 : index
    %c0_64 = arith.constant 0 : index
    %90 = vector.load %arg20[%c0_63, %c0_64] : memref<8x32xf32, #tpu.memory_space<vmem>>, vector<8x32xf32>
    tpu.vector_store %arg20[%c0_63, %c0_64], %89 {strides = array<i32>} : memref<8x32xf32, #tpu.memory_space<vmem>>, vector<8x32xf32>,
    return
  }
  func.func @transform_0(%arg0: i32) -> (i32, i32) {
    %c0_i32 = arith.constant 0 : i32
    %c0_i32_0 = arith.constant 0 : i32
    return %arg0, %c0_i32 : i32, i32
  }
  func.func @transform_1(%arg0: i32) -> (i32, i32, i32) {
    %c0_i32 = arith.constant 0 : i32
    %c0_i32_0 = arith.constant 0 : i32
    %c0_i32_1 = arith.constant 0 : i32
    return %c0_i32, %arg0, %c0_i32_0 : i32, i32, i32
  }
  func.func @transform_2(%arg0: i32) -> (i32, i32, i32) {
    %c0_i32 = arith.constant 0 : i32
    %c0_i32_0 = arith.constant 0 : i32
    %c0_i32_1 = arith.constant 0 : i32
    return %c0_i32, %arg0, %c0_i32_0 : i32, i32, i32
  }
  func.func @transform_3(%arg0: i32) -> (i32, i32, i32) {
    %c0_i32 = arith.constant 0 : i32
    %c0_i32_0 = arith.constant 0 : i32
    %c0_i32_1 = arith.constant 0 : i32
    return %arg0, %c0_i32, %c0_i32_0 : i32, i32, i32
  }
  func.func @transform_4(%arg0: i32) -> (i32, i32) {
    %c0_i32 = arith.constant 0 : i32
    %c0_i32_0 = arith.constant 0 : i32
    %c0_i32_1 = arith.constant 0 : i32
    return %c0_i32, %c0_i32_0 : i32, i32
  }
  func.func @transform_5(%arg0: i32) -> (i32, i32) {
    %c0_i32 = arith.constant 0 : i32
    %c0_i32_0 = arith.constant 0 : i32
    %c0_i32_1 = arith.constant 0 : i32
    return %c0_i32, %c0_i32_0 : i32, i32
  }
  func.func @transform_6(%arg0: i32) -> (i32, i32) {
    %c0_i32 = arith.constant 0 : i32
    %c0_i32_0 = arith.constant 0 : i32
    %c0_i32_1 = arith.constant 0 : i32
    return %c0_i32, %c0_i32_0 : i32, i32
  }
  func.func @transform_7(%arg0: i32) -> (i32, i32) {
    %c0_i32 = arith.constant 0 : i32
    %c0_i32_0 = arith.constant 0 : i32
    %c0_i32_1 = arith.constant 0 : i32
    return %c0_i32, %c0_i32_0 : i32, i32
  }
  func.func @transform_8(%arg0: i32) -> (i32, i32) {
    %c0_i32 = arith.constant 0 : i32
    %c0_i32_0 = arith.constant 0 : i32
    %c0_i32_1 = arith.constant 0 : i32
    return %c0_i32, %c0_i32_0 : i32, i32
  }
  func.func @transform_9(%arg0: i32) -> (i32, i32) {
    %c0_i32 = arith.constant 0 : i32
    %c0_i32_0 = arith.constant 0 : i32
    %c0_i32_1 = arith.constant 0 : i32
    return %c0_i32, %c0_i32_0 : i32, i32
  }
  func.func @transform_10(%arg0: i32) -> (i32, i32) {
    %c0_i32 = arith.constant 0 : i32
    %c0_i32_0 = arith.constant 0 : i32
    %c0_i32_1 = arith.constant 0 : i32
    return %c0_i32, %c0_i32_0 : i32, i32
  }
  func.func @transform_11(%arg0: i32) -> (i32, i32) {
    %c0_i32 = arith.constant 0 : i32
    %c0_i32_0 = arith.constant 0 : i32
    %c0_i32_1 = arith.constant 0 : i32
    return %c0_i32, %c0_i32_0 : i32, i32
  }
  func.func @transform_12(%arg0: i32) -> (i32, i32) {
    %c0_i32 = arith.constant 0 : i32
    %c0_i32_0 = arith.constant 0 : i32
    %c0_i32_1 = arith.constant 0 : i32
    return %c0_i32, %c0_i32_0 : i32, i32
  }
  func.func @transform_13(%arg0: i32) -> (i32, i32) {
    %c0_i32 = arith.constant 0 : i32
    %c0_i32_0 = arith.constant 0 : i32
    %c0_i32_1 = arith.constant 0 : i32
    return %c0_i32, %c0_i32_0 : i32, i32
  }
  func.func @transform_14(%arg0: i32) -> (i32, i32) {
    %c0_i32 = arith.constant 0 : i32
    %c0_i32_0 = arith.constant 0 : i32
    %c0_i32_1 = arith.constant 0 : i32
    return %c0_i32, %c0_i32_0 : i32, i32
  }
  func.func @transform_15(%arg0: i32) -> (i32, i32) {
    %c0_i32 = arith.constant 0 : i32
    %c0_i32_0 = arith.constant 0 : i32
    %c0_i32_1 = arith.constant 0 : i32
    return %c0_i32, %c0_i32_0 : i32, i32
  }
  func.func @transform_16(%arg0: i32) -> (i32, i32) {
    %c0_i32 = arith.constant 0 : i32
    %c0_i32_0 = arith.constant 0 : i32
    %c0_i32_1 = arith.constant 0 : i32
    return %c0_i32, %c0_i32_0 : i32, i32
  }
  func.func @transform_17(%arg0: i32) -> (i32, i32) {
    %c0_i32 = arith.constant 0 : i32
    %c0_i32_0 = arith.constant 0 : i32
    %c0_i32_1 = arith.constant 0 : i32
    return %c0_i32, %c0_i32_0 : i32, i32
  }
  func.func @transform_18(%arg0: i32) -> (i32, i32) {
    %c0_i32 = arith.constant 0 : i32
    %c0_i32_0 = arith.constant 0 : i32
    %c0_i32_1 = arith.constant 0 : i32
    return %c0_i32, %c0_i32_0 : i32, i32
  }
  func.func @transform_19(%arg0: i32) -> (i32, i32) {
    %c0_i32 = arith.constant 0 : i32
    %c0_i32_0 = arith.constant 0 : i32
    return %arg0, %c0_i32 : i32, i32
  }
  func.func @transform_20(%arg0: i32) -> (i32, i32, i32) {
    %c0_i32 = arith.constant 0 : i32
    %c0_i32_0 = arith.constant 0 : i32
    %c0_i32_1 = arith.constant 0 : i32
    return %c0_i32, %arg0, %c0_i32_0 : i32, i32, i32
  }
  func.func @transform_21(%arg0: i32) -> (i32, i32, i32) {
    %c0_i32 = arith.constant 0 : i32
    %c0_i32_0 = arith.constant 0 : i32
    %c0_i32_1 = arith.constant 0 : i32
    return %c0_i32, %arg0, %c0_i32_0 : i32, i32, i32
  }
}

</mosaic_0001>

<llo_original>
// kernel: tpu_custom_call.1
$region0: #{tpu_custom_call.1}
  #allocation0 [shape = 'u32[]', space=smem, size = 0x4, offset = 0x4, fixed_abs, tag = 'smem constant byte address 0x4 - core index']
  #allocation1 [shape = 'u32[72,128]{1,0:T(1,128)}', space=vmem, size = 0x9000, scoped, tag = 'internal scratch']
  %s0 = inlined_call_operand.hbm [shape: f32[8,32], index: 0, kind: input, shape index: {}]
  %s1 = inlined_call_operand.hbm [shape: f32[1,8,32], index: 1, kind: input, shape index: {}]
  %s2 = inlined_call_operand.hbm [shape: f32[1,8,32], index: 2, kind: input, shape index: {}]
  %s3 = inlined_call_operand.hbm [shape: f32[8,8,32], index: 3, kind: input, shape index: {}]
  %s4 = inlined_call_operand.hbm [shape: f32[32,32], index: 4, kind: input, shape index: {}]
  %s5 = inlined_call_operand.hbm [shape: f32[32,32], index: 5, kind: input, shape index: {}]
  %s6 = inlined_call_operand.hbm [shape: f32[32,32], index: 6, kind: input, shape index: {}]
  %s7 = inlined_call_operand.hbm [shape: f32[32,32], index: 7, kind: input, shape index: {}]
  %s8 = inlined_call_operand.hbm [shape: f32[32,32], index: 8, kind: input, shape index: {}]
  %s9 = inlined_call_operand.hbm [shape: f32[32,32], index: 9, kind: input, shape index: {}]
  %s10 = inlined_call_operand.hbm [shape: f32[32,32], index: 10, kind: input, shape index: {}]
  %s11 = inlined_call_operand.hbm [shape: f32[32,32], index: 11, kind: input, shape index: {}]
  %s12 = inlined_call_operand.hbm [shape: f32[32,32], index: 12, kind: input, shape index: {}]
  %s13 = inlined_call_operand.hbm [shape: f32[32,32], index: 13, kind: input, shape index: {}]
  %s14 = inlined_call_operand.hbm [shape: f32[32,32], index: 14, kind: input, shape index: {}]
  %s15 = inlined_call_operand.vmem [shape: f32[1,32], index: 15, kind: input, shape index: {}]
  %s16 = inlined_call_operand.vmem [shape: f32[1,32], index: 16, kind: input, shape index: {}]
  %s17 = inlined_call_operand.vmem [shape: f32[1,32], index: 17, kind: input, shape index: {}]
  %s18 = inlined_call_operand.vmem [shape: f32[1,32], index: 18, kind: input, shape index: {}]
  %s19 = inlined_call_operand.hbm [shape: f32[8,32], index: 19, kind: output, shape index: {0}]
  %s20 = inlined_call_operand.hbm [shape: f32[1,8,32], index: 20, kind: output, shape index: {1}]
  %s21 = inlined_call_operand.hbm [shape: f32[1,8,32], index: 21, kind: output, shape index: {2}]
  %22 = xla_tuple %s19, %s20, %s21
  %s23 = sld [smem:[#allocation0]]
  $region162: #{tpu_custom_call.1} parent=0
    _
  %s25 = ssub.s32 1, %s23
  %s26 = scalar_select 0, %s25, %s23
  $region1: #{tpu_custom_call.1} parent=0
    #allocation2 [shape = 'u8[4096]{0}', space=vmem, size = 0x1000, scoped, tag = 'input window, operand 0, single buffered']
    #allocation3 [shape = 's32[1]{0}', space=sflag, size = 0x4, scoped, tag = 'scoped memory for tpu_custom_call.1']
    #allocation4 [shape = 's32[1]{0}', space=sflag, size = 0x4, scoped, tag = 'scoped memory for tpu_custom_call.1']
    #allocation5 [shape = 'u8[4096]{0}', space=vmem, size = 0x1000, scoped, tag = 'input window, operand 1, single buffered']
    #allocation6 [shape = 's32[1]{0}', space=sflag, size = 0x4, scoped, tag = 'scoped memory for tpu_custom_call.1']
    #allocation7 [shape = 'u8[4096]{0}', space=vmem, size = 0x1000, scoped, tag = 'input window, operand 2, single buffered']
    #allocation8 [shape = 'u8[32768]{0}', space=vmem, size = 0x8000, scoped, tag = 'input window, operand 3, single buffered']
    #allocation9 [shape = 's32[1]{0}', space=sflag, size = 0x4, scoped, tag = 'scoped memory for tpu_custom_call.1']
    #allocation10 [shape = 'u8[16384]{0}', space=vmem, size = 0x4000, scoped, tag = 'input window, operand 4, single buffered']
    #allocation11 [shape = 'u8[16384]{0}', space=vmem, size = 0x4000, scoped, tag = 'input window, operand 5, single buffered']
    #allocation12 [shape = 's32[1]{0}', space=sflag, size = 0x4, scoped, tag = 'scoped memory for tpu_custom_call.1']
    #allocation13 [shape = 'u8[16384]{0}', space=vmem, size = 0x4000, scoped, tag = 'input window, operand 6, single buffered']
    #allocation14 [shape = 'u8[16384]{0}', space=vmem, size = 0x4000, scoped, tag = 'input window, operand 7, single buffered']
    #allocation15 [shape = 's32[1]{0}', space=sflag, size = 0x4, scoped, tag = 'scoped memory for tpu_custom_call.1']
    #allocation16 [shape = 'u8[16384]{0}', space=vmem, size = 0x4000, scoped, tag = 'input window, operand 8, single buffered']
    #allocation17 [shape = 'u8[16384]{0}', space=vmem, size = 0x4000, scoped, tag = 'input window, operand 9, single buffered']
    #allocation18 [shape = 's32[1]{0}', space=sflag, size = 0x4, scoped, tag = 'scoped memory for tpu_custom_call.1']
    #allocation19 [shape = 'u8[16384]{0}', space=vmem, size = 0x4000, scoped, tag = 'input window, operand 10, single buffered']
    #allocation20 [shape = 'u8[16384]{0}', space=vmem, size = 0x4000, scoped, tag = 'input window, operand 11, single buffered']
    #allocation21 [shape = 's32[1]{0}', space=sflag, size = 0x4, scoped, tag = 'scoped memory for tpu_custom_call.1']
    #allocation22 [shape = 'u8[16384]{0}', space=vmem, size = 0x4000, scoped, tag = 'input window, operand 12, single buffered']
    #allocation23 [shape = 'u8[16384]{0}', space=vmem, size = 0x4000, scoped, tag = 'input window, operand 13, single buffered']
    #allocation24 [shape = 's32[1]{0}', space=sflag, size = 0x4, scoped, tag = 'scoped memory for tpu_custom_call.1']
    #allocation25 [shape = 'u8[16384]{0}', space=vmem, size = 0x4000, scoped, tag = 'input window, operand 14, single buffered']
    #allocation26 [shape = 'u8[4096]{0}', space=vmem, size = 0x1000, scoped, tag = 'output window, operand 0, single buffered']
    #allocation27 [shape = 'u8[4096]{0}', space=vmem, size = 0x1000, scoped, tag = 'output window, operand 1, single buffered']
    #allocation28 [shape = 's32[1]{0}', space=sflag, size = 0x4, scoped, tag = 'scoped memory for tpu_custom_call.1']
    #allocation29 [shape = 'u8[4096]{0}', space=vmem, size = 0x1000, scoped, tag = 'output window, operand 2, single buffered']
    %27 = vsyncpa [#allocation3], 0
    %28 = vsyncpa [#allocation6], 0
    %29 = vsyncpa [#allocation9], 0
    %30 = vsyncpa [#allocation12], 0
    %31 = vsyncpa [#allocation15], 0
    %32 = vsyncpa [#allocation18], 0
    %33 = vsyncpa [#allocation21], 0
    %34 = vsyncpa [#allocation24], 0
    %35 = vsyncpa [#allocation4], 0
    %36 = vsyncpa [#allocation28], 0
    // Predicated region
    $region2: #{tpu_custom_call.1} parent=1 // pred_check
      _
    $region3: #{tpu_custom_call.1} parent=1 // pred_check_branch
      %38 = sbr.rel (0) target = $region5
    $region4: #{tpu_custom_call.1} parent=1 // pred_region
      %40 = vsyncadd [#allocation3], 0
      %s42 = sshll.u32 %s0, 4
      %s43 = int_to_ptr.hbm [resolvable:$true] %s42
      %s44 = sshll.u32 [#allocation2], 4
      %s45 = int_to_ptr.vmem [resolvable:$true] %s44
      %47 = dma.hbm_to_vmem [thread:$0]  %s43, 128, %s45, [#allocation3]
    $region5: #{tpu_custom_call.1} parent=1 // pred_fallthru
      _
    // Predicated region
    $region6: #{tpu_custom_call.1} parent=1 // pred_check
      _
    $region7: #{tpu_custom_call.1} parent=1 // pred_check_branch
      %49 = sbr.rel (0) target = $region9
    $region8: #{tpu_custom_call.1} parent=1 // pred_region
      %51 = vsyncadd [#allocation6], 0
      %s53 = sshll.u32 %s1, 4
      %s54 = int_to_ptr.hbm [resolvable:$true] %s53
      %s55 = sshll.u32 [#allocation5], 4
      %s56 = int_to_ptr.vmem [resolvable:$true] %s55
      %58 = dma.hbm_to_vmem [thread:$0]  %s54, 128, %s56, [#allocation6]
    $region9: #{tpu_custom_call.1} parent=1 // pred_fallthru
      _
    // Predicated region
    $region10: #{tpu_custom_call.1} parent=1 // pred_check
      _
    $region11: #{tpu_custom_call.1} parent=1 // pred_check_branch
      %60 = sbr.rel (0) target = $region13
    $region12: #{tpu_custom_call.1} parent=1 // pred_region
      %62 = vsyncadd [#allocation6], 0
      %s64 = sshll.u32 %s2, 4
      %s65 = int_to_ptr.hbm [resolvable:$true] %s64
      %s66 = sshll.u32 [#allocation7], 4
      %s67 = int_to_ptr.vmem [resolvable:$true] %s66
      %69 = dma.hbm_to_vmem [thread:$0]  %s65, 128, %s67, [#allocation6]
    $region13: #{tpu_custom_call.1} parent=1 // pred_fallthru
      _
    // Predicated region
    $region14: #{tpu_custom_call.1} parent=1 // pred_check
      _
    $region15: #{tpu_custom_call.1} parent=1 // pred_check_branch
      %71 = sbr.rel (0) target = $region17
    $region16: #{tpu_custom_call.1} parent=1 // pred_region
      %73 = vsyncadd [#allocation9], 0
      %s74 = sshll.u32 %s3, 4
      %s75 = int_to_ptr.hbm [resolvable:$true] %s74
      %s76 = sshll.u32 [#allocation8], 4
      %s77 = int_to_ptr.vmem [resolvable:$true] %s76
      %82 = dma.hbm_to_vmem [thread:$0]  %s75, 1024, %s77, [#allocation9], 128, 128, 8
    $region17: #{tpu_custom_call.1} parent=1 // pred_fallthru
      _
    // Predicated region
    $region18: #{tpu_custom_call.1} parent=1 // pred_check
      _
    $region19: #{tpu_custom_call.1} parent=1 // pred_check_branch
      %84 = sbr.rel (0) target = $region21
    $region20: #{tpu_custom_call.1} parent=1 // pred_region
      %86 = vsyncadd [#allocation9], 0
      %s87 = sshll.u32 %s4, 4
      %s88 = int_to_ptr.hbm [resolvable:$true] %s87
      %s89 = sshll.u32 [#allocation10], 4
      %s90 = int_to_ptr.vmem [resolvable:$true] %s89
      %95 = dma.hbm_to_vmem [thread:$0]  %s88, 512, %s90, [#allocation9], 128, 128, 8
    $region21: #{tpu_custom_call.1} parent=1 // pred_fallthru
      _
    // Predicated region
    $region22: #{tpu_custom_call.1} parent=1 // pred_check
      _
    $region23: #{tpu_custom_call.1} parent=1 // pred_check_branch
      %97 = sbr.rel (0) target = $region25
    $region24: #{tpu_custom_call.1} parent=1 // pred_region
      %99 = vsyncadd [#allocation12], 0
      %s100 = sshll.u32 %s5, 4
      %s101 = int_to_ptr.hbm [resolvable:$true] %s100
      %s102 = sshll.u32 [#allocation11], 4
      %s103 = int_to_ptr.vmem [resolvable:$true] %s102
      %108 = dma.hbm_to_vmem [thread:$0]  %s101, 512, %s103, [#allocation12], 128, 128, 8
    $region25: #{tpu_custom_call.1} parent=1 // pred_fallthru
      _
    // Predicated region
    $region26: #{tpu_custom_call.1} parent=1 // pred_check
      _
    $region27: #{tpu_custom_call.1} parent=1 // pred_check_branch
      %110 = sbr.rel (0) target = $region29
    $region28: #{tpu_custom_call.1} parent=1 // pred_region
      %112 = vsyncadd [#allocation12], 0
      %s113 = sshll.u32 %s6, 4
      %s114 = int_to_ptr.hbm [resolvable:$true] %s113
      %s115 = sshll.u32 [#allocation13], 4
      %s116 = int_to_ptr.vmem [resolvable:$true] %s115
      %121 = dma.hbm_to_vmem [thread:$0]  %s114, 512, %s116, [#allocation12], 128, 128, 8
    $region29: #{tpu_custom_call.1} parent=1 // pred_fallthru
      _
    // Predicated region
    $region30: #{tpu_custom_call.1} parent=1 // pred_check
      _
    $region31: #{tpu_custom_call.1} parent=1 // pred_check_branch
      %123 = sbr.rel (0) target = $region33
    $region32: #{tpu_custom_call.1} parent=1 // pred_region
      %125 = vsyncadd [#allocation15], 0
      %s126 = sshll.u32 %s7, 4
      %s127 = int_to_ptr.hbm [resolvable:$true] %s126
      %s128 = sshll.u32 [#allocation14], 4
      %s129 = int_to_ptr.vmem [resolvable:$true] %s128
      %134 = dma.hbm_to_vmem [thread:$0]  %s127, 512, %s129, [#allocation15], 128, 128, 8
    $region33: #{tpu_custom_call.1} parent=1 // pred_fallthru
      _
    // Predicated region
    $region34: #{tpu_custom_call.1} parent=1 // pred_check
      _
    $region35: #{tpu_custom_call.1} parent=1 // pred_check_branch
      %136 = sbr.rel (0) target = $region37
    $region36: #{tpu_custom_call.1} parent=1 // pred_region
      %138 = vsyncadd [#allocation15], 0
      %s139 = sshll.u32 %s8, 4
      %s140 = int_to_ptr.hbm [resolvable:$true] %s139
      %s141 = sshll.u32 [#allocation16], 4
      %s142 = int_to_ptr.vmem [resolvable:$true] %s141
      %147 = dma.hbm_to_vmem [thread:$0]  %s140, 512, %s142, [#allocation15], 128, 128, 8
    $region37: #{tpu_custom_call.1} parent=1 // pred_fallthru
      _
    // Predicated region
    $region38: #{tpu_custom_call.1} parent=1 // pred_check
      _
    $region39: #{tpu_custom_call.1} parent=1 // pred_check_branch
      %149 = sbr.rel (0) target = $region41
    $region40: #{tpu_custom_call.1} parent=1 // pred_region
      %151 = vsyncadd [#allocation18], 0
      %s152 = sshll.u32 %s9, 4
      %s153 = int_to_ptr.hbm [resolvable:$true] %s152
      %s154 = sshll.u32 [#allocation17], 4
      %s155 = int_to_ptr.vmem [resolvable:$true] %s154
      %160 = dma.hbm_to_vmem [thread:$0]  %s153, 512, %s155, [#allocation18], 128, 128, 8
    $region41: #{tpu_custom_call.1} parent=1 // pred_fallthru
      _
    // Predicated region
    $region42: #{tpu_custom_call.1} parent=1 // pred_check
      _
    $region43: #{tpu_custom_call.1} parent=1 // pred_check_branch
      %162 = sbr.rel (0) target = $region45
    $region44: #{tpu_custom_call.1} parent=1 // pred_region
      %164 = vsyncadd [#allocation18], 0
      %s165 = sshll.u32 %s10, 4
      %s166 = int_to_ptr.hbm [resolvable:$true] %s165
      %s167 = sshll.u32 [#allocation19], 4
      %s168 = int_to_ptr.vmem [resolvable:$true] %s167
      %173 = dma.hbm_to_vmem [thread:$0]  %s166, 512, %s168, [#allocation18], 128, 128, 8
    $region45: #{tpu_custom_call.1} parent=1 // pred_fallthru
      _
    // Predicated region
    $region46: #{tpu_custom_call.1} parent=1 // pred_check
      _
    $region47: #{tpu_custom_call.1} parent=1 // pred_check_branch
      %175 = sbr.rel (0) target = $region49
    $region48: #{tpu_custom_call.1} parent=1 // pred_region
      %177 = vsyncadd [#allocation21], 0
      %s178 = sshll.u32 %s11, 4
      %s179 = int_to_ptr.hbm [resolvable:$true] %s178
      %s180 = sshll.u32 [#allocation20], 4
      %s181 = int_to_ptr.vmem [resolvable:$true] %s180
      %186 = dma.hbm_to_vmem [thread:$0]  %s179, 512, %s181, [#allocation21], 128, 128, 8
    $region49: #{tpu_custom_call.1} parent=1 // pred_fallthru
      _
    // Predicated region
    $region50: #{tpu_custom_call.1} parent=1 // pred_check
      _
    $region51: #{tpu_custom_call.1} parent=1 // pred_check_branch
      %188 = sbr.rel (0) target = $region53
    $region52: #{tpu_custom_call.1} parent=1 // pred_region
      %190 = vsyncadd [#allocation21], 0
      %s191 = sshll.u32 %s12, 4
      %s192 = int_to_ptr.hbm [resolvable:$true] %s191
      %s193 = sshll.u32 [#allocation22], 4
      %s194 = int_to_ptr.vmem [resolvable:$true] %s193
      %199 = dma.hbm_to_vmem [thread:$0]  %s192, 512, %s194, [#allocation21], 128, 128, 8
    $region53: #{tpu_custom_call.1} parent=1 // pred_fallthru
      _
    // Predicated region
    $region54: #{tpu_custom_call.1} parent=1 // pred_check
      _
    $region55: #{tpu_custom_call.1} parent=1 // pred_check_branch
      %201 = sbr.rel (0) target = $region57
    $region56: #{tpu_custom_call.1} parent=1 // pred_region
      %203 = vsyncadd [#allocation24], 0
      %s204 = sshll.u32 %s13, 4
      %s205 = int_to_ptr.hbm [resolvable:$true] %s204
      %s206 = sshll.u32 [#allocation23], 4
      %s207 = int_to_ptr.vmem [resolvable:$true] %s206
      %212 = dma.hbm_to_vmem [thread:$0]  %s205, 512, %s207, [#allocation24], 128, 128, 8
    $region57: #{tpu_custom_call.1} parent=1 // pred_fallthru
      _
    // Predicated region
    $region58: #{tpu_custom_call.1} parent=1 // pred_check
      _
    $region59: #{tpu_custom_call.1} parent=1 // pred_check_branch
      %214 = sbr.rel (0) target = $region61
    $region60: #{tpu_custom_call.1} parent=1 // pred_region
      %216 = vsyncadd [#allocation24], 0
      %s217 = sshll.u32 %s14, 4
      %s218 = int_to_ptr.hbm [resolvable:$true] %s217
      %s219 = sshll.u32 [#allocation25], 4
      %s220 = int_to_ptr.vmem [resolvable:$true] %s219
      %225 = dma.hbm_to_vmem [thread:$0]  %s218, 512, %s220, [#allocation24], 128, 128, 8
    $region61: #{tpu_custom_call.1} parent=1 // pred_fallthru
      _
    // Predicated region
    $region62: #{tpu_custom_call.1} parent=1 // pred_check
      _
    $region63: #{tpu_custom_call.1} parent=1 // pred_check_branch
      %227 = sbr.rel (0) target = $region65
    $region64: #{tpu_custom_call.1} parent=1 // pred_region
      _
    $region65: #{tpu_custom_call.1} parent=1 // pred_fallthru
      _
    // Predicated region
    $region66: #{tpu_custom_call.1} parent=1 // pred_check
      _
    $region67: #{tpu_custom_call.1} parent=1 // pred_check_branch
      %229 = sbr.rel (0) target = $region69
    $region68: #{tpu_custom_call.1} parent=1 // pred_region
      _
    $region69: #{tpu_custom_call.1} parent=1 // pred_fallthru
      _
    // Predicated region
    $region70: #{tpu_custom_call.1} parent=1 // pred_check
      _
    $region71: #{tpu_custom_call.1} parent=1 // pred_check_branch
      %231 = sbr.rel (0) target = $region73
    $region72: #{tpu_custom_call.1} parent=1 // pred_region
      _
    $region73: #{tpu_custom_call.1} parent=1 // pred_fallthru
      _
    // Predicated region
    $region74: #{tpu_custom_call.1} parent=1 // pred_check
      _
    $region75: #{tpu_custom_call.1} parent=1 // pred_check_branch
      %233 = sbr.rel (0) target = $region77
    $region76: #{tpu_custom_call.1} parent=1 // pred_region
      _
    $region77: #{tpu_custom_call.1} parent=1 // pred_fallthru
      _
    // Predicated region
    $region78: #{tpu_custom_call.1} parent=1 // pred_check
      _
    $region79: #{tpu_custom_call.1} parent=1 // pred_check_branch
      %235 = sbr.rel (0) target = $region81
    $region80: #{tpu_custom_call.1} parent=1 // pred_region
      %237 = dma.done [#allocation3], 128
    $region81: #{tpu_custom_call.1} parent=1 // pred_fallthru
      _
    // Predicated region
    $region82: #{tpu_custom_call.1} parent=1 // pred_check
      _
    $region83: #{tpu_custom_call.1} parent=1 // pred_check_branch
      %239 = sbr.rel (0) target = $region85
    $region84: #{tpu_custom_call.1} parent=1 // pred_region
      %241 = dma.done [#allocation6], 128
    $region85: #{tpu_custom_call.1} parent=1 // pred_fallthru
      _
    // Predicated region
    $region86: #{tpu_custom_call.1} parent=1 // pred_check
      _
    $region87: #{tpu_custom_call.1} parent=1 // pred_check_branch
      %243 = sbr.rel (0) target = $region89
    $region88: #{tpu_custom_call.1} parent=1 // pred_region
      %245 = dma.done [#allocation6], 128
    $region89: #{tpu_custom_call.1} parent=1 // pred_fallthru
      _
    // Predicated region
    $region90: #{tpu_custom_call.1} parent=1 // pred_check
      _
    $region91: #{tpu_custom_call.1} parent=1 // pred_check_branch
      %247 = sbr.rel (0) target = $region93
    $region92: #{tpu_custom_call.1} parent=1 // pred_region
      %249 = dma.done [#allocation9], 1024
    $region93: #{tpu_custom_call.1} parent=1 // pred_fallthru
      _
    // Predicated region
    $region94: #{tpu_custom_call.1} parent=1 // pred_check
      _
    $region95: #{tpu_custom_call.1} parent=1 // pred_check_branch
      %251 = sbr.rel (0) target = $region97
    $region96: #{tpu_custom_call.1} parent=1 // pred_region
      %253 = dma.done [#allocation9], 512
    $region97: #{tpu_custom_call.1} parent=1 // pred_fallthru
      _
    // Predicated region
    $region98: #{tpu_custom_call.1} parent=1 // pred_check
      _
    $region99: #{tpu_custom_call.1} parent=1 // pred_check_branch
      %255 = sbr.rel (0) target = $region101
    $region100: #{tpu_custom_call.1} parent=1 // pred_region
      %257 = dma.done [#allocation12], 512
    $region101: #{tpu_custom_call.1} parent=1 // pred_fallthru
      _
    // Predicated region
    $region102: #{tpu_custom_call.1} parent=1 // pred_check
      _
    $region103: #{tpu_custom_call.1} parent=1 // pred_check_branch
      %259 = sbr.rel (0) target = $region105
    $region104: #{tpu_custom_call.1} parent=1 // pred_region
      %261 = dma.done [#allocation12], 512
    $region105: #{tpu_custom_call.1} parent=1 // pred_fallthru
      _
    // Predicated region
    $region106: #{tpu_custom_call.1} parent=1 // pred_check
      _
    $region107: #{tpu_custom_call.1} parent=1 // pred_check_branch
      %263 = sbr.rel (0) target = $region109
    $region108: #{tpu_custom_call.1} parent=1 // pred_region
      %265 = dma.done [#allocation15], 512
    $region109: #{tpu_custom_call.1} parent=1 // pred_fallthru
      _
    // Predicated region
    $region110: #{tpu_custom_call.1} parent=1 // pred_check
      _
    $region111: #{tpu_custom_call.1} parent=1 // pred_check_branch
      %267 = sbr.rel (0) target = $region113
    $region112: #{tpu_custom_call.1} parent=1 // pred_region
      %269 = dma.done [#allocation15], 512
    $region113: #{tpu_custom_call.1} parent=1 // pred_fallthru
      _
    // Predicated region
    $region114: #{tpu_custom_call.1} parent=1 // pred_check
      _
    $region115: #{tpu_custom_call.1} parent=1 // pred_check_branch
      %271 = sbr.rel (0) target = $region117
    $region116: #{tpu_custom_call.1} parent=1 // pred_region
      %273 = dma.done [#allocation18], 512
    $region117: #{tpu_custom_call.1} parent=1 // pred_fallthru
      _
    // Predicated region
    $region118: #{tpu_custom_call.1} parent=1 // pred_check
      _
    $region119: #{tpu_custom_call.1} parent=1 // pred_check_branch
      %275 = sbr.rel (0) target = $region121
    $region120: #{tpu_custom_call.1} parent=1 // pred_region
      %277 = dma.done [#allocation18], 512
    $region121: #{tpu_custom_call.1} parent=1 // pred_fallthru
      _
    // Predicated region
    $region122: #{tpu_custom_call.1} parent=1 // pred_check
      _
    $region123: #{tpu_custom_call.1} parent=1 // pred_check_branch
      %279 = sbr.rel (0) target = $region125
    $region124: #{tpu_custom_call.1} parent=1 // pred_region
      %281 = dma.done [#allocation21], 512
    $region125: #{tpu_custom_call.1} parent=1 // pred_fallthru
      _
    // Predicated region
    $region126: #{tpu_custom_call.1} parent=1 // pred_check
      _
    $region127: #{tpu_custom_call.1} parent=1 // pred_check_branch
      %283 = sbr.rel (0) target = $region129
    $region128: #{tpu_custom_call.1} parent=1 // pred_region
      %285 = dma.done [#allocation21], 512
    $region129: #{tpu_custom_call.1} parent=1 // pred_fallthru
      _
    // Predicated region
    $region130: #{tpu_custom_call.1} parent=1 // pred_check
      _
    $region131: #{tpu_custom_call.1} parent=1 // pred_check_branch
      %287 = sbr.rel (0) target = $region133
    $region132: #{tpu_custom_call.1} parent=1 // pred_region
      %289 = dma.done [#allocation24], 512
    $region133: #{tpu_custom_call.1} parent=1 // pred_fallthru
      _
    // Predicated region
    $region134: #{tpu_custom_call.1} parent=1 // pred_check
      _
    $region135: #{tpu_custom_call.1} parent=1 // pred_check_branch
      %291 = sbr.rel (0) target = $region137
    $region136: #{tpu_custom_call.1} parent=1 // pred_region
      %293 = dma.done [#allocation24], 512
    $region137: #{tpu_custom_call.1} parent=1 // pred_fallthru
      _
    %v294 = vld [vmem:[#allocation2] sm:$0xff]
    %v295 = vld [vmem:[#allocation8] sm:$0xff]
    %v296 = vld [vmem:[#allocation8 + $0x8] sm:$0xff]
    %v297 = vld [vmem:[#allocation8 + $0x10] sm:$0xff]
    %v298 = vld [vmem:[#allocation8 + $0x18] sm:$0xff]
    %v299 = vld [vmem:[#allocation8 + $0x20] sm:$0xff]
    %v300 = vld [vmem:[#allocation8 + $0x28] sm:$0xff]
    %v301 = vld [vmem:[#allocation8 + $0x30] sm:$0xff]
    %v302 = vld [vmem:[#allocation8 + $0x38] sm:$0xff]
    %v303 = vld [vmem:[#allocation5] sm:$0xff]
    %v304 = vld [vmem:[#allocation7] sm:$0xff]
    %v305 = vld [vmem:[#allocation14] sm:$0xff]
    %v306 = vld [vmem:[#allocation14 + $0x8] sm:$0xff]
    %v307 = vld [vmem:[#allocation14 + $0x10] sm:$0xff]
    %v308 = vld [vmem:[#allocation14 + $0x18] sm:$0xff]
    %v309 = vld [vmem:[#allocation20] sm:$0xff]
    %v310 = vld [vmem:[#allocation20 + $0x8] sm:$0xff]
    %v311 = vld [vmem:[#allocation20 + $0x10] sm:$0xff]
    %v312 = vld [vmem:[#allocation20 + $0x18] sm:$0xff]
    %vm313 = vcmask 261120
    %v315 = vsel %vm313, %v303, 0
    %317 = vmatpush.msra.mxu0 0.0
    %318 = vmatpush.msra.mxu0 0.0
    %319 = vmatpush.msra.mxu0 0.0
    %320 = vmatpush.msra.mxu0 0.0
    %321 = vmatpush.msra.mxu0 0.0
    %322 = vmatpush.msra.mxu0 0.0
    %323 = vmatpush.msra.mxu0 0.0
    %324 = vmatpush.msra.mxu0 0.0
    %325 = vmatpush.msra.mxu0 0.0
    %326 = vmatpush.msra.mxu0 0.0
    %327 = vmatpush.msra.mxu0 0.0
    %328 = vmatpush.msra.mxu0 0.0
    %329 = vmatpush.msra.mxu0 %v312
    %330 = vmatpush.msra.mxu0 %v311
    %331 = vmatpush.msra.mxu0 %v310
    %332 = vmatpush.msra.mxu0 %v309
    %333 = vmatmul.f32.gmra.mxu0 %v315
    %v334 = vpop.f32.mrf.mxu0
    %v335 = vadd.f32 0.0, %v334
    %336 = vdwg.mxu0
    %v338 = vsel %vm313, %v294, 0
    %340 = vmatpush.msra.mxu0 0.0
    %341 = vmatpush.msra.mxu0 0.0
    %342 = vmatpush.msra.mxu0 0.0
    %343 = vmatpush.msra.mxu0 0.0
    %344 = vmatpush.msra.mxu0 0.0
    %345 = vmatpush.msra.mxu0 0.0
    %346 = vmatpush.msra.mxu0 0.0
    %347 = vmatpush.msra.mxu0 0.0
    %348 = vmatpush.msra.mxu0 0.0
    %349 = vmatpush.msra.mxu0 0.0
    %350 = vmatpush.msra.mxu0 0.0
    %351 = vmatpush.msra.mxu0 0.0
    %352 = vmatpush.msra.mxu0 %v308
    %353 = vmatpush.msra.mxu0 %v307
    %354 = vmatpush.msra.mxu0 %v306
    %355 = vmatpush.msra.mxu0 %v305
    %356 = vmatmul.f32.gmra.mxu0 %v338
    %v357 = vpop.f32.mrf.mxu0
    %v358 = vadd.f32 %v335, %v357
    %359 = vdwg.mxu0
    %v360 = vld [vmem:[%s15] sm:$0x1]
    %v362 = vperm.slane %v360, 0
    %v364 = vadd.f32 %v358, %v362
    %v365 = vld [vmem:[#allocation16] sm:$0xff]
    %v366 = vld [vmem:[#allocation16 + $0x8] sm:$0xff]
    %v367 = vld [vmem:[#allocation16 + $0x10] sm:$0xff]
    %v368 = vld [vmem:[#allocation16 + $0x18] sm:$0xff]
    %v369 = vld [vmem:[#allocation22] sm:$0xff]
    %v370 = vld [vmem:[#allocation22 + $0x8] sm:$0xff]
    %v371 = vld [vmem:[#allocation22 + $0x10] sm:$0xff]
    %v372 = vld [vmem:[#allocation22 + $0x18] sm:$0xff]
    %373 = vmatpush.msra.mxu0 0.0
    %374 = vmatpush.msra.mxu0 0.0
    %375 = vmatpush.msra.mxu0 0.0
    %376 = vmatpush.msra.mxu0 0.0
    %377 = vmatpush.msra.mxu0 0.0
    %378 = vmatpush.msra.mxu0 0.0
    %379 = vmatpush.msra.mxu0 0.0
    %380 = vmatpush.msra.mxu0 0.0
    %381 = vmatpush.msra.mxu0 0.0
    %382 = vmatpush.msra.mxu0 0.0
    %383 = vmatpush.msra.mxu0 0.0
    %384 = vmatpush.msra.mxu0 0.0
    %385 = vmatpush.msra.mxu0 %v372
    %386 = vmatpush.msra.mxu0 %v371
    %387 = vmatpush.msra.mxu0 %v370
    %388 = vmatpush.msra.mxu0 %v369
    %389 = vmatmul.f32.gmra.mxu0 %v315
    %v390 = vpop.f32.mrf.mxu0
    %v391 = vadd.f32 0.0, %v390
    %392 = vdwg.mxu0
    %393 = vmatpush.msra.mxu0 0.0
    %394 = vmatpush.msra.mxu0 0.0
    %395 = vmatpush.msra.mxu0 0.0
    %396 = vmatpush.msra.mxu0 0.0
    %397 = vmatpush.msra.mxu0 0.0
    %398 = vmatpush.msra.mxu0 0.0
    %399 = vmatpush.msra.mxu0 0.0
    %400 = vmatpush.msra.mxu0 0.0
    %401 = vmatpush.msra.mxu0 0.0
    %402 = vmatpush.msra.mxu0 0.0
    %403 = vmatpush.msra.mxu0 0.0
    %404 = vmatpush.msra.mxu0 0.0
    %405 = vmatpush.msra.mxu0 %v368
    %406 = vmatpush.msra.mxu0 %v367
    %407 = vmatpush.msra.mxu0 %v366
    %408 = vmatpush.msra.mxu0 %v365
    %409 = vmatmul.f32.gmra.mxu0 %v338
    %v410 = vpop.f32.mrf.mxu0
    %v411 = vadd.f32 %v391, %v410
    %412 = vdwg.mxu0
    %v413 = vld [vmem:[%s16] sm:$0x1]
    %v415 = vperm.slane %v413, 0
    %v417 = vadd.f32 %v411, %v415
    %v418 = vld [vmem:[#allocation17] sm:$0xff]
    %v419 = vld [vmem:[#allocation17 + $0x8] sm:$0xff]
    %v420 = vld [vmem:[#allocation17 + $0x10] sm:$0xff]
    %v421 = vld [vmem:[#allocation17 + $0x18] sm:$0xff]
    %v422 = vld [vmem:[#allocation23] sm:$0xff]
    %v423 = vld [vmem:[#allocation23 + $0x8] sm:$0xff]
    %v424 = vld [vmem:[#allocation23 + $0x10] sm:$0xff]
    %v425 = vld [vmem:[#allocation23 + $0x18] sm:$0xff]
    %426 = vmatpush.msra.mxu0 0.0
    %427 = vmatpush.msra.mxu0 0.0
    %428 = vmatpush.msra.mxu0 0.0
    %429 = vmatpush.msra.mxu0 0.0
    %430 = vmatpush.msra.mxu0 0.0
    %431 = vmatpush.msra.mxu0 0.0
    %432 = vmatpush.msra.mxu0 0.0
    %433 = vmatpush.msra.mxu0 0.0
    %434 = vmatpush.msra.mxu0 0.0
    %435 = vmatpush.msra.mxu0 0.0
    %436 = vmatpush.msra.mxu0 0.0
    %437 = vmatpush.msra.mxu0 0.0
    %438 = vmatpush.msra.mxu0 %v425
    %439 = vmatpush.msra.mxu0 %v424
    %440 = vmatpush.msra.mxu0 %v423
    %441 = vmatpush.msra.mxu0 %v422
    %442 = vmatmul.f32.gmra.mxu0 %v315
    %v443 = vpop.f32.mrf.mxu0
    %v444 = vadd.f32 0.0, %v443
    %445 = vdwg.mxu0
    %446 = vmatpush.msra.mxu0 0.0
    %447 = vmatpush.msra.mxu0 0.0
    %448 = vmatpush.msra.mxu0 0.0
    %449 = vmatpush.msra.mxu0 0.0
    %450 = vmatpush.msra.mxu0 0.0
    %451 = vmatpush.msra.mxu0 0.0
    %452 = vmatpush.msra.mxu0 0.0
    %453 = vmatpush.msra.mxu0 0.0
    %454 = vmatpush.msra.mxu0 0.0
    %455 = vmatpush.msra.mxu0 0.0
    %456 = vmatpush.msra.mxu0 0.0
    %457 = vmatpush.msra.mxu0 0.0
    %458 = vmatpush.msra.mxu0 %v421
    %459 = vmatpush.msra.mxu0 %v420
    %460 = vmatpush.msra.mxu0 %v419
    %461 = vmatpush.msra.mxu0 %v418
    %462 = vmatmul.f32.gmra.mxu0 %v338
    %v463 = vpop.f32.mrf.mxu0
    %v464 = vadd.f32 %v444, %v463
    %465 = vdwg.mxu0
    %v466 = vld [vmem:[%s17] sm:$0x1]
    %v468 = vperm.slane %v466, 0
    %v470 = vadd.f32 %v464, %v468
    %v471 = vld [vmem:[#allocation19] sm:$0xff]
    %v472 = vld [vmem:[#allocation19 + $0x8] sm:$0xff]
    %v473 = vld [vmem:[#allocation19 + $0x10] sm:$0xff]
    %v474 = vld [vmem:[#allocation19 + $0x18] sm:$0xff]
    %v475 = vld [vmem:[#allocation25] sm:$0xff]
    %v476 = vld [vmem:[#allocation25 + $0x8] sm:$0xff]
    %v477 = vld [vmem:[#allocation25 + $0x10] sm:$0xff]
    %v478 = vld [vmem:[#allocation25 + $0x18] sm:$0xff]
    %479 = vmatpush.msra.mxu0 0.0
    %480 = vmatpush.msra.mxu0 0.0
    %481 = vmatpush.msra.mxu0 0.0
    %482 = vmatpush.msra.mxu0 0.0
    %483 = vmatpush.msra.mxu0 0.0
    %484 = vmatpush.msra.mxu0 0.0
    %485 = vmatpush.msra.mxu0 0.0
    %486 = vmatpush.msra.mxu0 0.0
    %487 = vmatpush.msra.mxu0 0.0
    %488 = vmatpush.msra.mxu0 0.0
    %489 = vmatpush.msra.mxu0 0.0
    %490 = vmatpush.msra.mxu0 0.0
    %491 = vmatpush.msra.mxu0 %v478
    %492 = vmatpush.msra.mxu0 %v477
    %493 = vmatpush.msra.mxu0 %v476
    %494 = vmatpush.msra.mxu0 %v475
    %495 = vmatmul.f32.gmra.mxu0 %v315
    %v496 = vpop.f32.mrf.mxu0
    %v497 = vadd.f32 0.0, %v496
    %498 = vdwg.mxu0
    %499 = vmatpush.msra.mxu0 0.0
    %500 = vmatpush.msra.mxu0 0.0
    %501 = vmatpush.msra.mxu0 0.0
    %502 = vmatpush.msra.mxu0 0.0
    %503 = vmatpush.msra.mxu0 0.0
    %504 = vmatpush.msra.mxu0 0.0
    %505 = vmatpush.msra.mxu0 0.0
    %506 = vmatpush.msra.mxu0 0.0
    %507 = vmatpush.msra.mxu0 0.0
    %508 = vmatpush.msra.mxu0 0.0
    %509 = vmatpush.msra.mxu0 0.0
    %510 = vmatpush.msra.mxu0 0.0
    %511 = vmatpush.msra.mxu0 %v474
    %512 = vmatpush.msra.mxu0 %v473
    %513 = vmatpush.msra.mxu0 %v472
    %514 = vmatpush.msra.mxu0 %v471
    %515 = vmatmul.f32.gmra.mxu0 %v338
    %v516 = vpop.f32.mrf.mxu0
    %v517 = vadd.f32 %v497, %v516
    %518 = vdwg.mxu0
    %v519 = vld [vmem:[%s18] sm:$0x1]
    %v521 = vperm.slane %v519, 0
    %v523 = vadd.f32 %v517, %v521
    %v524 = vxor.u32 %v364, 2147483648
    %v525 = vmul.f32 %v524, 1.442695
    %v526 = vpow.pop %v525
    %v527 = vadd.f32 %v526, 1.0
    %v528 = vrcp.pop %v527
    %v529 = vmul.f32 %v527, %v528
    %v530 = vsub.f32 1.0, %v529
    %v531 = vmul.f32 %v528, %v530
    %v532 = vadd.f32 %v528, %v531
    %vm533 = vweird.f32 %v527
    %vm534 = vweird.f32 %v528
    %vm535 = vmor %vm533, %vm534
    %v536 = vsel %vm535, %v528, %v532
    %v537 = vand.u32 2147483647, %v527
    %vm538 = vcmp.eq.f32.partialorder %v537, 8.507059e+37
    %v539 = vand.u32 %v527, 2147483648
    %v540 = vor.u32 1.1754944e-38, %v539
    %v541 = vsel %vm538, %v540, %v536
    %v542 = vmul.f32 1.0, %v541
    %v543 = vxor.u32 %v417, 2147483648
    %v544 = vmul.f32 %v543, 1.442695
    %v545 = vpow.pop %v544
    %v546 = vadd.f32 %v545, 1.0
    %v547 = vrcp.pop %v546
    %v548 = vmul.f32 %v546, %v547
    %v549 = vsub.f32 1.0, %v548
    %v550 = vmul.f32 %v547, %v549
    %v551 = vadd.f32 %v547, %v550
    %vm552 = vweird.f32 %v546
    %vm553 = vweird.f32 %v547
    %vm554 = vmor %vm552, %vm553
    %v555 = vsel %vm554, %v547, %v551
    %v556 = vand.u32 2147483647, %v546
    %vm557 = vcmp.eq.f32.partialorder %v556, 8.507059e+37
    %v558 = vand.u32 %v546, 2147483648
    %v559 = vor.u32 1.1754944e-38, %v558
    %v560 = vsel %vm557, %v559, %v555
    %v561 = vmul.f32 1.0, %v560
    %v562 = vtanh.pop %v470
    %v563 = vxor.u32 %v523, 2147483648
    %v564 = vmul.f32 %v563, 1.442695
    %v565 = vpow.pop %v564
    %v566 = vadd.f32 %v565, 1.0
    %v567 = vrcp.pop %v566
    %v568 = vmul.f32 %v566, %v567
    %v569 = vsub.f32 1.0, %v568
    %v570 = vmul.f32 %v567, %v569
    %v571 = vadd.f32 %v567, %v570
    %vm572 = vweird.f32 %v566
    %vm573 = vweird.f32 %v567
    %vm574 = vmor %vm572, %vm573
    %v575 = vsel %vm574, %v567, %v571
    %v576 = vand.u32 2147483647, %v566
    %vm577 = vcmp.eq.f32.partialorder %v576, 8.507059e+37
    %v578 = vand.u32 %v566, 2147483648
    %v579 = vor.u32 1.1754944e-38, %v578
    %v580 = vsel %vm577, %v579, %v575
    %v581 = vmul.f32 1.0, %v580
    %v582 = vmul.f32 %v561, %v304
    %v583 = vmul.f32 %v542, %v562
    %v584 = vadd.f32 %v582, %v583
    %v585 = vtanh.pop %v584
    %v586 = vmul.f32 %v581, %v585
    %587 = vst.msk [vmem:[#allocation27] sm:$0xff] %vm313, %v586
    %588 = vst.msk [vmem:[#allocation29] sm:$0xff] %vm313, %v584
    %v589 = vld [vmem:[#allocation10] sm:$0xff]
    %v590 = vld [vmem:[#allocation10 + $0x8] sm:$0xff]
    %v591 = vld [vmem:[#allocation10 + $0x10] sm:$0xff]
    %v592 = vld [vmem:[#allocation10 + $0x18] sm:$0xff]
    %v594 = vsel %vm313, %v586, 0
    %596 = vmatpush.msra.mxu0 0.0
    %597 = vmatpush.msra.mxu0 0.0
    %598 = vmatpush.msra.mxu0 0.0
    %599 = vmatpush.msra.mxu0 0.0
    %600 = vmatpush.msra.mxu0 0.0
    %601 = vmatpush.msra.mxu0 0.0
    %602 = vmatpush.msra.mxu0 0.0
    %603 = vmatpush.msra.mxu0 0.0
    %604 = vmatpush.msra.mxu0 0.0
    %605 = vmatpush.msra.mxu0 0.0
    %606 = vmatpush.msra.mxu0 0.0
    %607 = vmatpush.msra.mxu0 0.0
    %608 = vmatpush.msra.mxu0 %v592
    %609 = vmatpush.msra.mxu0 %v591
    %610 = vmatpush.msra.mxu0 %v590
    %611 = vmatpush.msra.mxu0 %v589
    %612 = vmatmul.f32.gmra.mxu0 %v594
    %v613 = vpop.f32.mrf.mxu0
    %v614 = vadd.f32 0.0, %v613
    %615 = vdwg.mxu0
    %v617 = vrot.slane %v614, 1
    %v618 = vrot.slane %v614, 2
    %v619 = vrot.slane %v614, 3
    %v620 = vrot.slane %v614, 4
    %v621 = vrot.slane %v614, 5
    %v622 = vrot.slane %v614, 6
    %v623 = vrot.slane %v614, 7
    %v624 = vperm.slane %v614, 0
    %v625 = vperm.slane %v617, 0
    %v626 = vperm.slane %v618, 0
    %v627 = vperm.slane %v619, 0
    %v628 = vperm.slane %v620, 0
    %v629 = vperm.slane %v621, 0
    %v630 = vperm.slane %v622, 0
    %v631 = vperm.slane %v623, 0
    %v640 = vmul.f32 %v295, %v624
    %v641 = vmul.f32 %v296, %v625
    %v642 = vmul.f32 %v297, %v626
    %v643 = vmul.f32 %v298, %v627
    %v644 = vmul.f32 %v299, %v628
    %v645 = vmul.f32 %v300, %v629
    %v646 = vmul.f32 %v301, %v630
    %v647 = vmul.f32 %v302, %v631
    %v648 = vsel %vm313, %v640, 0.0
    %649 = vadd.xlane.f32.xlu0 %v648
    %v650 = vpop.xlane.xlu0 %649
    %v651 = vsel %vm313, %v641, 0.0
    %652 = vadd.xlane.f32.xlu0 %v651
    %v653 = vpop.xlane.xlu0 %652
    %v654 = vsel %vm313, %v642, 0.0
    %655 = vadd.xlane.f32.xlu0 %v654
    %v656 = vpop.xlane.xlu0 %655
    %v657 = vsel %vm313, %v643, 0.0
    %658 = vadd.xlane.f32.xlu0 %v657
    %v659 = vpop.xlane.xlu0 %658
    %v660 = vsel %vm313, %v644, 0.0
    %661 = vadd.xlane.f32.xlu0 %v660
    %v662 = vpop.xlane.xlu0 %661
    %v663 = vsel %vm313, %v645, 0.0
    %664 = vadd.xlane.f32.xlu0 %v663
    %v665 = vpop.xlane.xlu0 %664
    %v666 = vsel %vm313, %v646, 0.0
    %667 = vadd.xlane.f32.xlu0 %v666
    %v668 = vpop.xlane.xlu0 %667
    %v669 = vsel %vm313, %v647, 0.0
    %670 = vadd.xlane.f32.xlu0 %v669
    %v671 = vpop.xlane.xlu0 %670
    %v680 = vlaneseq
    %v681 = vand.u32 %v680, 127
    %v682 = vperm.slane %v650, %v681
    %v683 = vperm.slane %v653, %v681
    %v684 = vperm.slane %v656, %v681
    %v685 = vperm.slane %v659, %v681
    %v686 = vperm.slane %v662, %v681
    %v687 = vperm.slane %v665, %v681
    %v688 = vperm.slane %v668, %v681
    %v689 = vperm.slane %v671, %v681
    %vm690 = vcmask 1041409
    %v691 = vsel %vm690, %v683, %v682
    %vm692 = vcmask 1042434
    %v693 = vsel %vm692, %v684, %v691
    %vm694 = vcmask 1043459
    %v695 = vsel %vm694, %v685, %v693
    %vm696 = vcmask 1044484
    %v697 = vsel %vm696, %v686, %v695
    %vm698 = vcmask 1045509
    %v699 = vsel %vm698, %v687, %v697
    %vm700 = vcmask 1046534
    %v701 = vsel %vm700, %v688, %v699
    %vm702 = vcmask 1047559
    %v703 = vsel %vm702, %v689, %v701
    %vm705 = vcmask 64512
    %v706 = vsel %vm705, %v703, -inf
    %707 = vmax.xlane.f32.xlu0 %v706
    %v708 = vpop.xlane.xlu0 %707
    %v710 = vperm.slane %v708, 0
    %v711 = vperm.slane %v708, 1
    %v712 = vperm.slane %v708, 2
    %v713 = vperm.slane %v708, 3
    %v714 = vperm.slane %v708, 4
    %v715 = vperm.slane %v708, 5
    %v716 = vperm.slane %v708, 6
    %v717 = vperm.slane %v708, 7
    %v726 = vsub.f32 %v650, %v710
    %v727 = vsub.f32 %v653, %v711
    %v728 = vsub.f32 %v656, %v712
    %v729 = vsub.f32 %v659, %v713
    %v730 = vsub.f32 %v662, %v714
    %v731 = vsub.f32 %v665, %v715
    %v732 = vsub.f32 %v668, %v716
    %v733 = vsub.f32 %v671, %v717
    %v734 = vmul.f32 %v726, 1.442695
    %v735 = vpow.pop %v734
    %v736 = vmul.f32 %v727, 1.442695
    %v737 = vpow.pop %v736
    %v738 = vmul.f32 %v728, 1.442695
    %v739 = vpow.pop %v738
    %v740 = vmul.f32 %v729, 1.442695
    %v741 = vpow.pop %v740
    %v742 = vmul.f32 %v730, 1.442695
    %v743 = vpow.pop %v742
    %v744 = vmul.f32 %v731, 1.442695
    %v745 = vpow.pop %v744
    %v746 = vmul.f32 %v732, 1.442695
    %v747 = vpow.pop %v746
    %v748 = vmul.f32 %v733, 1.442695
    %v749 = vpow.pop %v748
    %758 = vset.pattern.permute.xlu0 0
    %759 = vperm.xlu0 %758, %v735
    %v760 = vpop.permute.xlu0 %759
    %761 = vset.pattern.permute.xlu0 0
    %762 = vperm.xlu0 %761, %v737
    %v763 = vpop.permute.xlu0 %762
    %764 = vset.pattern.permute.xlu0 0
    %765 = vperm.xlu0 %764, %v739
    %v766 = vpop.permute.xlu0 %765
    %767 = vset.pattern.permute.xlu0 0
    %768 = vperm.xlu0 %767, %v741
    %v769 = vpop.permute.xlu0 %768
    %770 = vset.pattern.permute.xlu0 0
    %771 = vperm.xlu0 %770, %v743
    %v772 = vpop.permute.xlu0 %771
    %773 = vset.pattern.permute.xlu0 0
    %774 = vperm.xlu0 %773, %v745
    %v775 = vpop.permute.xlu0 %774
    %776 = vset.pattern.permute.xlu0 0
    %777 = vperm.xlu0 %776, %v747
    %v778 = vpop.permute.xlu0 %777
    %779 = vset.pattern.permute.xlu0 0
    %780 = vperm.xlu0 %779, %v749
    %v781 = vpop.permute.xlu0 %780
    %v782 = vperm.slane %v760, %v681
    %v783 = vperm.slane %v763, %v681
    %v784 = vperm.slane %v766, %v681
    %v785 = vperm.slane %v769, %v681
    %v786 = vperm.slane %v772, %v681
    %v787 = vperm.slane %v775, %v681
    %v788 = vperm.slane %v778, %v681
    %v789 = vperm.slane %v781, %v681
    %v790 = vsel %vm690, %v783, %v782
    %v791 = vsel %vm692, %v784, %v790
    %v792 = vsel %vm694, %v785, %v791
    %v793 = vsel %vm696, %v786, %v792
    %v794 = vsel %vm698, %v787, %v793
    %v795 = vsel %vm700, %v788, %v794
    %v796 = vsel %vm702, %v789, %v795
    %v798 = vsel %vm705, %v796, 0.0
    %799 = vadd.xlane.f32.xlu0 %v798
    %v800 = vpop.xlane.xlu0 %799
    %v801 = vrcp.pop %v800
    %v803 = vperm.slane %v801, 0
    %v804 = vperm.slane %v801, 1
    %v805 = vperm.slane %v801, 2
    %v806 = vperm.slane %v801, 3
    %v807 = vperm.slane %v801, 4
    %v808 = vperm.slane %v801, 5
    %v809 = vperm.slane %v801, 6
    %v810 = vperm.slane %v801, 7
    %v819 = vmul.f32 %v735, %v803
    %v820 = vmul.f32 %v737, %v804
    %v821 = vmul.f32 %v739, %v805
    %v822 = vmul.f32 %v741, %v806
    %v823 = vmul.f32 %v743, %v807
    %v824 = vmul.f32 %v745, %v808
    %v825 = vmul.f32 %v747, %v809
    %v826 = vmul.f32 %v749, %v810
    %828 = vset.pattern.permute.xlu0 0
    %829 = vperm.xlu0 %828, %v819
    %v830 = vpop.permute.xlu0 %829
    %833 = vset.pattern.permute.xlu0 0
    %834 = vperm.xlu0 %833, %v820
    %v835 = vpop.permute.xlu0 %834
    %838 = vset.pattern.permute.xlu0 0
    %839 = vperm.xlu0 %838, %v821
    %v840 = vpop.permute.xlu0 %839
    %843 = vset.pattern.permute.xlu0 0
    %844 = vperm.xlu0 %843, %v822
    %v845 = vpop.permute.xlu0 %844
    %848 = vset.pattern.permute.xlu0 0
    %849 = vperm.xlu0 %848, %v823
    %v850 = vpop.permute.xlu0 %849
    %853 = vset.pattern.permute.xlu0 0
    %854 = vperm.xlu0 %853, %v824
    %v855 = vpop.permute.xlu0 %854
    %858 = vset.pattern.permute.xlu0 0
    %859 = vperm.xlu0 %858, %v825
    %v860 = vpop.permute.xlu0 %859
    %863 = vset.pattern.permute.xlu0 0
    %864 = vperm.xlu0 %863, %v826
    %v865 = vpop.permute.xlu0 %864
    %v867 = vmul.f32 %v830, %v295
    %v868 = vmul.f32 %v835, %v296
    %v869 = vmul.f32 %v840, %v297
    %v870 = vmul.f32 %v845, %v298
    %v871 = vmul.f32 %v850, %v299
    %v872 = vmul.f32 %v855, %v300
    %v873 = vmul.f32 %v860, %v301
    %v874 = vmul.f32 %v865, %v302
    %v875 = vsel %vm313, %v867, 0.0
    %v876 = vrot.slane %v875, 4
    %v877 = vadd.f32 %v875, %v876
    %v878 = vrot.slane %v877, 2
    %v879 = vadd.f32 %v877, %v878
    %v880 = vrot.slane %v879, 1
    %v881 = vadd.f32 %v879, %v880
    %v882 = vsel %vm313, %v868, 0.0
    %v883 = vrot.slane %v882, 4
    %v884 = vadd.f32 %v882, %v883
    %v885 = vrot.slane %v884, 2
    %v886 = vadd.f32 %v884, %v885
    %v887 = vrot.slane %v886, 1
    %v888 = vadd.f32 %v886, %v887
    %v889 = vsel %vm313, %v869, 0.0
    %v890 = vrot.slane %v889, 4
    %v891 = vadd.f32 %v889, %v890
    %v892 = vrot.slane %v891, 2
    %v893 = vadd.f32 %v891, %v892
    %v894 = vrot.slane %v893, 1
    %v895 = vadd.f32 %v893, %v894
    %v896 = vsel %vm313, %v870, 0.0
    %v897 = vrot.slane %v896, 4
    %v898 = vadd.f32 %v896, %v897
    %v899 = vrot.slane %v898, 2
    %v900 = vadd.f32 %v898, %v899
    %v901 = vrot.slane %v900, 1
    %v902 = vadd.f32 %v900, %v901
    %v903 = vsel %vm313, %v871, 0.0
    %v904 = vrot.slane %v903, 4
    %v905 = vadd.f32 %v903, %v904
    %v906 = vrot.slane %v905, 2
    %v907 = vadd.f32 %v905, %v906
    %v908 = vrot.slane %v907, 1
    %v909 = vadd.f32 %v907, %v908
    %v910 = vsel %vm313, %v872, 0.0
    %v911 = vrot.slane %v910, 4
    %v912 = vadd.f32 %v910, %v911
    %v913 = vrot.slane %v912, 2
    %v914 = vadd.f32 %v912, %v913
    %v915 = vrot.slane %v914, 1
    %v916 = vadd.f32 %v914, %v915
    %v917 = vsel %vm313, %v873, 0.0
    %v918 = vrot.slane %v917, 4
    %v919 = vadd.f32 %v917, %v918
    %v920 = vrot.slane %v919, 2
    %v921 = vadd.f32 %v919, %v920
    %v922 = vrot.slane %v921, 1
    %v923 = vadd.f32 %v921, %v922
    %v924 = vsel %vm313, %v874, 0.0
    %v925 = vrot.slane %v924, 4
    %v926 = vadd.f32 %v924, %v925
    %v927 = vrot.slane %v926, 2
    %v928 = vadd.f32 %v926, %v927
    %v929 = vrot.slane %v928, 1
    %v930 = vadd.f32 %v928, %v929
    %v931 = vld [vmem:[#allocation11] sm:$0xff]
    %v932 = vld [vmem:[#allocation11 + $0x8] sm:$0xff]
    %v933 = vld [vmem:[#allocation11 + $0x10] sm:$0xff]
    %v934 = vld [vmem:[#allocation11 + $0x18] sm:$0xff]
    %v935 = vld [vmem:[#allocation13] sm:$0xff]
    %v936 = vld [vmem:[#allocation13 + $0x8] sm:$0xff]
    %v937 = vld [vmem:[#allocation13 + $0x10] sm:$0xff]
    %v938 = vld [vmem:[#allocation13 + $0x18] sm:$0xff]
    %939 = vmatpush.msra.mxu0 0.0
    %940 = vmatpush.msra.mxu0 0.0
    %941 = vmatpush.msra.mxu0 0.0
    %942 = vmatpush.msra.mxu0 0.0
    %943 = vmatpush.msra.mxu0 0.0
    %944 = vmatpush.msra.mxu0 0.0
    %945 = vmatpush.msra.mxu0 0.0
    %946 = vmatpush.msra.mxu0 0.0
    %947 = vmatpush.msra.mxu0 0.0
    %948 = vmatpush.msra.mxu0 0.0
    %949 = vmatpush.msra.mxu0 0.0
    %950 = vmatpush.msra.mxu0 0.0
    %951 = vmatpush.msra.mxu0 %v938
    %952 = vmatpush.msra.mxu0 %v937
    %953 = vmatpush.msra.mxu0 %v936
    %954 = vmatpush.msra.mxu0 %v935
    %955 = vmatmul.f32.gmra.mxu0 %v594
    %v956 = vpop.f32.mrf.mxu0
    %v957 = vadd.f32 0.0, %v956
    %958 = vdwg.mxu0
    %v967 = vsel %vm690, %v888, %v881
    %v968 = vsel %vm692, %v895, %v967
    %v969 = vsel %vm694, %v902, %v968
    %v970 = vsel %vm696, %v909, %v969
    %v971 = vsel %vm698, %v916, %v970
    %v972 = vsel %vm700, %v923, %v971
    %v973 = vsel %vm702, %v930, %v972
    %v974 = vsel %vm313, %v973, 0
    %976 = vmatpush.msra.mxu0 0.0
    %977 = vmatpush.msra.mxu0 0.0
    %978 = vmatpush.msra.mxu0 0.0
    %979 = vmatpush.msra.mxu0 0.0
    %980 = vmatpush.msra.mxu0 0.0
    %981 = vmatpush.msra.mxu0 0.0
    %982 = vmatpush.msra.mxu0 0.0
    %983 = vmatpush.msra.mxu0 0.0
    %984 = vmatpush.msra.mxu0 0.0
    %985 = vmatpush.msra.mxu0 0.0
    %986 = vmatpush.msra.mxu0 0.0
    %987 = vmatpush.msra.mxu0 0.0
    %988 = vmatpush.msra.mxu0 %v934
    %989 = vmatpush.msra.mxu0 %v933
    %990 = vmatpush.msra.mxu0 %v932
    %991 = vmatpush.msra.mxu0 %v931
    %992 = vmatmul.f32.gmra.mxu0 %v974
    %v993 = vpop.f32.mrf.mxu0
    %v994 = vadd.f32 %v957, %v993
    %995 = vdwg.mxu0
    %996 = vst.msk [vmem:[#allocation26] sm:$0xff] %vm313, %v994
    // Predicated region
    $region138: #{tpu_custom_call.1} parent=1 // pred_check
      _
    $region139: #{tpu_custom_call.1} parent=1 // pred_check_branch
      %998 = sbr.rel (0) target = $region141
    $region140: #{tpu_custom_call.1} parent=1 // pred_region
      %1000 = vsyncadd [#allocation4], 0
      %s1002 = sshll.u32 [#allocation26], 4
      %s1003 = int_to_ptr.vmem [resolvable:$true] %s1002
      %s1004 = sshll.u32 %s19, 4
      %s1005 = int_to_ptr.hbm [resolvable:$true] %s1004
      %1007 = dma.vmem_to_hbm [thread:$0]  %s1003, 128, %s1005, [#allocation4]
    $region141: #{tpu_custom_call.1} parent=1 // pred_fallthru
      _
    // Predicated region
    $region142: #{tpu_custom_call.1} parent=1 // pred_check
      _
    $region143: #{tpu_custom_call.1} parent=1 // pred_check_branch
      %1009 = sbr.rel (0) target = $region145
    $region144: #{tpu_custom_call.1} parent=1 // pred_region
      %1011 = vsyncadd [#allocation28], 0
      %s1013 = sshll.u32 [#allocation27], 4
      %s1014 = int_to_ptr.vmem [resolvable:$true] %s1013
      %s1015 = sshll.u32 %s20, 4
      %s1016 = int_to_ptr.hbm [resolvable:$true] %s1015
      %1018 = dma.vmem_to_hbm [thread:$0]  %s1014, 128, %s1016, [#allocation28]
    $region145: #{tpu_custom_call.1} parent=1 // pred_fallthru
      _
    // Predicated region
    $region146: #{tpu_custom_call.1} parent=1 // pred_check
      _
    $region147: #{tpu_custom_call.1} parent=1 // pred_check_branch
      %1020 = sbr.rel (0) target = $region149
    $region148: #{tpu_custom_call.1} parent=1 // pred_region
      %1022 = vsyncadd [#allocation28], 0
      %s1024 = sshll.u32 [#allocation29], 4
      %s1025 = int_to_ptr.vmem [resolvable:$true] %s1024
      %s1026 = sshll.u32 %s21, 4
      %s1027 = int_to_ptr.hbm [resolvable:$true] %s1026
      %1029 = dma.vmem_to_hbm [thread:$0]  %s1025, 128, %s1027, [#allocation28]
    $region149: #{tpu_custom_call.1} parent=1 // pred_fallthru
      _
    // Predicated region
    $region150: #{tpu_custom_call.1} parent=1 // pred_check
      _
    $region151: #{tpu_custom_call.1} parent=1 // pred_check_branch
      %1031 = sbr.rel (0) target = $region153
    $region152: #{tpu_custom_call.1} parent=1 // pred_region
      %1033 = dma.done [#allocation4], 128
    $region153: #{tpu_custom_call.1} parent=1 // pred_fallthru
      _
    // Predicated region
    $region154: #{tpu_custom_call.1} parent=1 // pred_check
      _
    $region155: #{tpu_custom_call.1} parent=1 // pred_check_branch
      %1035 = sbr.rel (0) target = $region157
    $region156: #{tpu_custom_call.1} parent=1 // pred_region
      %1037 = dma.done [#allocation28], 128
    $region157: #{tpu_custom_call.1} parent=1 // pred_fallthru
      _
    // Predicated region
    $region158: #{tpu_custom_call.1} parent=1 // pred_check
      _
    $region159: #{tpu_custom_call.1} parent=1 // pred_check_branch
      %1039 = sbr.rel (0) target = $region161
    $region160: #{tpu_custom_call.1} parent=1 // pred_region
      %1041 = dma.done [#allocation28], 128
    $region161: #{tpu_custom_call.1} parent=1 // pred_fallthru
      _
    %1042 = vsyncpa [#allocation3], 1
    %1043 = vsyncpa [#allocation6], 1
    %1044 = vsyncpa [#allocation9], 1
    %1045 = vsyncpa [#allocation12], 1
    %1046 = vsyncpa [#allocation15], 1
    %1047 = vsyncpa [#allocation18], 1
    %1048 = vsyncpa [#allocation21], 1
    %1049 = vsyncpa [#allocation24], 1
    %1050 = vsyncpa [#allocation4], 1
    %1051 = vsyncpa [#allocation28], 1

</llo_original>
